<compile_context>
chip_gen: v5e
topology: v5e:2x2
jax: 0.10.0
libtpu: 0.0.40
codegen_flags: <defaults>
</compile_context>

<pallas_src>
import jax
import jax.numpy as jnp
from jax.experimental import pallas as pl
from jax.experimental.pallas import tpu as pltpu

IMG_FEAT = 768
TXT_FEAT = 768
NUM_CLASSES = 10
PADDED_CLASSES = 128   # lane-dense output; sliced to NUM_CLASSES in the wrapper


# ---------------------------------------------------------------------------
# Fused Pallas kernel: streamed image matmul + text linear + classifier head
# ---------------------------------------------------------------------------

def _fused_forward_kernel(x_ref, pooled_ref, img_w_ref, img_b_ref,
                          txt_w_ref, txt_b_ref, cls_wi_ref, cls_wt_ref,
                          cls_b_ref, o_ref, acc_ref):
    k = pl.program_id(1)

    @pl.when(k == 0)
    def _():
        acc_ref[...] = jnp.zeros_like(acc_ref)

    # Streamed image matmul: bf16 operands, f32 MXU accumulation.
    acc_ref[...] += jnp.dot(x_ref[...], img_w_ref[...],
                            preferred_element_type=jnp.float32)

    # Epilogue (once per batch tile): biases, text linear, classifier head.
    @pl.when(k == pl.num_programs(1) - 1)
    def _():
        img_feat = acc_ref[...] + img_b_ref[...]                    # [tb, 768] f32
        txt_feat = (
            jnp.dot(pooled_ref[...], txt_w_ref[...],
                    preferred_element_type=jnp.float32)
            + txt_b_ref[...]
        )                                                           # [tb, 768] f32
        o_ref[...] = (
            jnp.dot(img_feat, cls_wi_ref[...],
                    preferred_element_type=jnp.float32)
            + jnp.dot(txt_feat, cls_wt_ref[...],
                      preferred_element_type=jnp.float32)
            + cls_b_ref[...]
        )                                                           # [tb, 128]


# ---------------------------------------------------------------------------
# Wrapper
# ---------------------------------------------------------------------------

def _round_up(x, m):
    return (x + m - 1) // m * m


def _largest_tile(dim, multiple, max_tile):
    """Largest multiple of `multiple` that divides `dim` and is <= max_tile."""
    best = None
    t = multiple
    while t <= min(dim, max_tile):
        if dim % t == 0:
            best = t
        t += multiple
    return best if best is not None else dim


def multimodal_classifier(images, tokens, params, *, tb_max=128, tk_max=512):
    """Forward pass matching MultiModalClassifier.forward semantics."""
    B = images.shape[0]
    # NCHW row-major flatten (torch .view(B, -1)); cast to bf16 in the wrapper
    # so the HBM->VMEM activation stream is half-width and no in-kernel convert.
    x_flat = images.reshape(B, -1).astype(jnp.bfloat16)
    K = x_flat.shape[1]
    assert K % 128 == 0, "flatten dim must be a multiple of 128 (pad upstream)"

    embed = params["embed"]
    vocab, E = embed.shape

    # Text embedding gather + mean-pool outside the kernel (no O(B*S*V) one-hot).
    tok = jnp.clip(tokens, 0, vocab - 1)     # validate range outside the kernel
    pooled = jnp.mean(jnp.take(embed, tok, axis=0), axis=1)         # [B, E] f32

    # Tile sizes: batch padded to a bf16-sublane multiple (16); K tile a
    # multiple of 128.  Caps keep the double-buffered working set
    # 2 * (tb*tk + tk*768) * 2B  <<  v7x's 32 MiB scoped VMEM.
    tb = min(tb_max, _round_up(B, 16))
    B_pad = _round_up(B, tb)
    tk = _largest_tile(K, 128, tk_max)

    pad_b = B_pad - B
    x_p = jnp.pad(x_flat, ((0, pad_b), (0, 0)))
    pooled_p = jnp.pad(pooled, ((0, pad_b), (0, 0)))

    grid = (B_pad // tb, K // tk)

    flops = (2 * B_pad * K * IMG_FEAT
             + 2 * B_pad * E * TXT_FEAT
             + 2 * B_pad * (IMG_FEAT + TXT_FEAT) * PADDED_CLASSES)
    bytes_accessed = (x_p.size * 2 + params["img_w"].size * 2
                      + pooled_p.size * 4 + params["txt_w"].size * 4
                      + params["cls_wi"].size * 4 + params["cls_wt"].size * 4
                      + (IMG_FEAT + TXT_FEAT + PADDED_CLASSES) * 4
                      + B_pad * PADDED_CLASSES * 4)

    logits_padded = pl.pallas_call(
        _fused_forward_kernel,
        out_shape=jax.ShapeDtypeStruct((B_pad, PADDED_CLASSES), jnp.float32),
        grid_spec=pltpu.PrefetchScalarGridSpec(
            num_scalar_prefetch=0,
            grid=grid,
            in_specs=[
                # streamed per grid step
                pl.BlockSpec((tb, tk), lambda b, k: (b, k)),            # x
                pl.BlockSpec((tb, E), lambda b, k: (b, 0)),             # pooled
                pl.BlockSpec((tk, IMG_FEAT), lambda b, k: (k, 0)),      # img_w
                # resident (constant block index -> DMA'd once)
                pl.BlockSpec((1, IMG_FEAT), lambda b, k: (0, 0)),       # img_b
                pl.BlockSpec((E, TXT_FEAT), lambda b, k: (0, 0)),       # txt_w
                pl.BlockSpec((1, TXT_FEAT), lambda b, k: (0, 0)),       # txt_b
                pl.BlockSpec((IMG_FEAT, PADDED_CLASSES), lambda b, k: (0, 0)),
                pl.BlockSpec((TXT_FEAT, PADDED_CLASSES), lambda b, k: (0, 0)),
                pl.BlockSpec((1, PADDED_CLASSES), lambda b, k: (0, 0)),  # cls_b
            ],
            out_specs=pl.BlockSpec((tb, PADDED_CLASSES), lambda b, k: (b, 0)),
            scratch_shapes=[pltpu.VMEM((tb, IMG_FEAT), jnp.float32)],
        ),
        compiler_params=pltpu.CompilerParams(
            dimension_semantics=("parallel", "arbitrary"),
            vmem_limit_bytes=32 * 1024 * 1024,
        ),
        cost_estimate=pl.CostEstimate(flops=flops, transcendentals=0,
                                      bytes_accessed=bytes_accessed),
    )(x_p, pooled_p,
      params["img_w"], params["img_b"],
      params["txt_w"], params["txt_b"],
      params["cls_wi"], params["cls_wt"], params["cls_b"])

    return logits_padded[:B, :NUM_CLASSES]


# ---------------------------------------------------------------------------
# Parameter init (deterministic, nn.Linear-style uniform(-1/sqrt(fan_in), .))
# ---------------------------------------------------------------------------

def _linear_params(key, fan_in, fan_out):
    kw, kb = jax.random.split(key)
    bound = 1.0 / jnp.sqrt(fan_in)
    w = jax.random.uniform(kw, (fan_in, fan_out), jnp.float32, -bound, bound)
    b = jax.random.uniform(kb, (fan_out,), jnp.float32, -bound, bound)
    return w, b


def make_params(key, flat_dim, embed_dim, vocab, num_classes):
    k_img, k_txt, k_cls, k_emb = jax.random.split(key, 4)
    img_w, img_b = _linear_params(k_img, flat_dim, IMG_FEAT)      # [K, 768]
    txt_w, txt_b = _linear_params(k_txt, embed_dim, TXT_FEAT)     # [E, 768]
    cls_w, cls_b = _linear_params(k_cls, IMG_FEAT + TXT_FEAT, num_classes)
    embed = jax.random.normal(k_emb, (vocab, embed_dim), jnp.float32) * 0.02

    pad = PADDED_CLASSES - num_classes
    cls_w_pad = jnp.pad(cls_w, ((0, 0), (0, pad)))                # [1536, 128]
    cls_b_pad = jnp.pad(cls_b, ((0, pad),)).reshape(1, -1)        # [1, 128]

    # Kernel-side params: big image weight in bf16 (halved HBM stream), biases
    # 2-D for in-kernel broadcast adds, classifier weight split/padded once.
    params = dict(
        img_w=img_w.astype(jnp.bfloat16),
        img_b=img_b.reshape(1, -1),
        txt_w=txt_w,
        txt_b=txt_b.reshape(1, -1),
        embed=embed,
        cls_wi=cls_w_pad[:IMG_FEAT, :],
        cls_wt=cls_w_pad[IMG_FEAT:, :],
        cls_b=cls_b_pad,
    )
    ref = dict(img_w=img_w, img_b=img_b, txt_w=txt_w, txt_b=txt_b,
               cls_w=cls_w, cls_b=cls_b, embed=embed)
    return params, ref


if __name__ == "__main__":
    key = jax.random.PRNGKey(0)
    k_p, k_x, k_tok = jax.random.split(key, 3)

    B, C, H, W = 2, 3, 16, 16          # C*H*W == 768 (flatten dim)
    S, E, VOCAB = 8, 32, 100

    params, ref_p = make_params(k_p, C * H * W, E, VOCAB, NUM_CLASSES)

    images = jax.random.normal(k_x, (B, C, H, W), jnp.float32)    # NCHW
    tokens = jax.random.randint(k_tok, (B, S), 0, VOCAB, jnp.int32)

    out = multimodal_classifier(images, tokens, params)
    out = jax.block_until_ready(out)
    assert out.shape == (B, NUM_CLASSES)
    assert out.dtype == jnp.float32

    # plain-JAX reference of the same math (image path uses the same bf16 cast)
    x_flat = images.reshape(B, -1)
    ref_img = jnp.dot(x_flat.astype(jnp.bfloat16),
                      ref_p["img_w"].astype(jnp.bfloat16),
                      preferred_element_type=jnp.float32) + ref_p["img_b"]
    emb = jnp.take(ref_p["embed"], tokens, axis=0)                # [B, S, E]
    ref_txt = jnp.mean(emb, axis=1) @ ref_p["txt_w"] + ref_p["txt_b"]
    ref = (jnp.concatenate([ref_img, ref_txt], axis=1) @ ref_p["cls_w"]
           + ref_p["cls_b"])
    assert jnp.allclose(out, ref, atol=2e-2, rtol=2e-2), \
        float(jnp.max(jnp.abs(out - ref)))

    print("KERNEL_OK")
</pallas_src>

<mosaic_0001>
module attributes {stable_mosaic.version = 11 : i64} {
  func.func @_fused_forward_kernel(%arg0: i32, %arg1: i32, %arg2: memref<16x384xbf16, #tpu.memory_space<vmem>>, %arg3: memref<16x32xf32, #tpu.memory_space<vmem>>, %arg4: memref<384x768xbf16, #tpu.memory_space<vmem>>, %arg5: memref<1x768xf32, #tpu.memory_space<vmem>>, %arg6: memref<32x768xf32, #tpu.memory_space<vmem>>, %arg7: memref<1x768xf32, #tpu.memory_space<vmem>>, %arg8: memref<768x128xf32, #tpu.memory_space<vmem>>, %arg9: memref<768x128xf32, #tpu.memory_space<vmem>>, %arg10: memref<1x128xf32, #tpu.memory_space<vmem>>, %arg11: memref<16x128xf32, #tpu.memory_space<vmem>>, %arg12: memref<16x768xf32, #tpu.memory_space<vmem>>) attributes {dimension_semantics = [#tpu.dimension_semantics<parallel>, #tpu.dimension_semantics<arbitrary>], iteration_bounds = array<i64: 1, 2>, scalar_prefetch = 0 : i64, scratch_operands = 1 : i64, tpu.core_type = #tpu.core_type<tc>, window_params = [{transform_indices = @transform_0, window_bounds = array<i64: 16, 384>}, {transform_indices = @transform_1, window_bounds = array<i64: 16, 32>}, {transform_indices = @transform_2, window_bounds = array<i64: 384, 768>}, {pipeline_mode = #tpu.pipeline_mode<synchronous>, transform_indices = @transform_3, window_bounds = array<i64: 1, 768>}, {pipeline_mode = #tpu.pipeline_mode<synchronous>, transform_indices = @transform_4, window_bounds = array<i64: 32, 768>}, {pipeline_mode = #tpu.pipeline_mode<synchronous>, transform_indices = @transform_5, window_bounds = array<i64: 1, 768>}, {pipeline_mode = #tpu.pipeline_mode<synchronous>, transform_indices = @transform_6, window_bounds = array<i64: 768, 128>}, {pipeline_mode = #tpu.pipeline_mode<synchronous>, transform_indices = @transform_7, window_bounds = array<i64: 768, 128>}, {pipeline_mode = #tpu.pipeline_mode<synchronous>, transform_indices = @transform_8, window_bounds = array<i64: 1, 128>}, {transform_indices = @transform_9, window_bounds = array<i64: 16, 128>}]} {
    %c0_i32 = arith.constant 0 : i32
    %0 = arith.cmpi eq, %arg1, %c0_i32 : i32
    %1 = arith.extui %0 : i1 to i32
    %c0_i32_0 = arith.constant 0 : i32
    %2 = arith.cmpi ne, %1, %c0_i32_0 : i32
    scf.if %2 {
      %cst_9 = arith.constant 0.000000e+00 : f32
      %12 = vector.broadcast %cst_9 : f32 to vector<16x768xf32>
      %c0_10 = arith.constant 0 : index
      %c0_11 = arith.constant 0 : index
      %13 = vector.load %arg12[%c0_10, %c0_11] : memref<16x768xf32, #tpu.memory_space<vmem>>, vector<16x768xf32>
      tpu.vector_store %arg12[%c0_10, %c0_11], %12 {strides = array<i32>} : memref<16x768xf32, #tpu.memory_space<vmem>>, vector<16x768xf32>,
    } else {
    }
    %c0 = arith.constant 0 : index
    %c0_1 = arith.constant 0 : index
    %3 = vector.load %arg12[%c0, %c0_1] : memref<16x768xf32, #tpu.memory_space<vmem>>, vector<16x768xf32>
    %c0_2 = arith.constant 0 : index
    %c0_3 = arith.constant 0 : index
    %4 = vector.load %arg2[%c0_2, %c0_3] : memref<16x384xbf16, #tpu.memory_space<vmem>>, vector<16x384xbf16>
    %c0_4 = arith.constant 0 : index
    %c0_5 = arith.constant 0 : index
    %5 = vector.load %arg4[%c0_4, %c0_5] : memref<384x768xbf16, #tpu.memory_space<vmem>>, vector<384x768xbf16>
    %cst = arith.constant dense<0.000000e+00> : vector<16x768xf32>
    %6 = tpu.matmul %4, %5, %cst {dimension_numbers = #tpu.dot_dimension_numbers<[1], [0], [0], [1], [0, 0, 1, 1], [], []>} : vector<16x384xbf16>, vector<384x768xbf16>, vector<16x768xf32> -> vector<16x768xf32>
    %7 = arith.addf %3, %6 : vector<16x768xf32>
    %c0_6 = arith.constant 0 : index
    %c0_7 = arith.constant 0 : index
    %8 = vector.load %arg12[%c0_6, %c0_7] : memref<16x768xf32, #tpu.memory_space<vmem>>, vector<16x768xf32>
    tpu.vector_store %arg12[%c0_6, %c0_7], %7 {strides = array<i32>} : memref<16x768xf32, #tpu.memory_space<vmem>>, vector<16x768xf32>,
    %c1_i32 = arith.constant 1 : i32
    %9 = arith.cmpi eq, %arg1, %c1_i32 : i32
    %10 = arith.extui %9 : i1 to i32
    %c0_i32_8 = arith.constant 0 : i32
    %11 = arith.cmpi ne, %10, %c0_i32_8 : i32
    scf.if %11 {
      %c0_9 = arith.constant 0 : index
      %c0_10 = arith.constant 0 : index
      %12 = vector.load %arg12[%c0_9, %c0_10] : memref<16x768xf32, #tpu.memory_space<vmem>>, vector<16x768xf32>
      %c0_11 = arith.constant 0 : index
      %c0_12 = arith.constant 0 : index
      %13 = vector.load %arg5[%c0_11, %c0_12] : memref<1x768xf32, #tpu.memory_space<vmem>>, vector<1x768xf32>
      %14 = vector.broadcast %13 : vector<1x768xf32> to vector<16x768xf32>
      %15 = arith.addf %12, %14 : vector<16x768xf32>
      %c0_13 = arith.constant 0 : index
      %c0_14 = arith.constant 0 : index
      %16 = vector.load %arg3[%c0_13, %c0_14] : memref<16x32xf32, #tpu.memory_space<vmem>>, vector<16x32xf32>
      %c0_15 = arith.constant 0 : index
      %c0_16 = arith.constant 0 : index
      %17 = vector.load %arg6[%c0_15, %c0_16] : memref<32x768xf32, #tpu.memory_space<vmem>>, vector<32x768xf32>
      %cst_17 = arith.constant dense<0.000000e+00> : vector<16x768xf32>
      %18 = tpu.matmul %16, %17, %cst_17 {dimension_numbers = #tpu.dot_dimension_numbers<[1], [0], [0], [1], [0, 0, 1, 1], [], []>} : vector<16x32xf32>, vector<32x768xf32>, vector<16x768xf32> -> vector<16x768xf32>
      %c0_18 = arith.constant 0 : index
      %c0_19 = arith.constant 0 : index
      %19 = vector.load %arg7[%c0_18, %c0_19] : memref<1x768xf32, #tpu.memory_space<vmem>>, vector<1x768xf32>
      %20 = vector.broadcast %19 : vector<1x768xf32> to vector<16x768xf32>
      %21 = arith.addf %18, %20 : vector<16x768xf32>
      %c0_20 = arith.constant 0 : index
      %c0_21 = arith.constant 0 : index
      %22 = vector.load %arg8[%c0_20, %c0_21] : memref<768x128xf32, #tpu.memory_space<vmem>>, vector<768x128xf32>
      %cst_22 = arith.constant dense<0.000000e+00> : vector<16x128xf32>
      %23 = tpu.matmul %15, %22, %cst_22 {dimension_numbers = #tpu.dot_dimension_numbers<[1], [0], [0], [1], [0, 0, 1, 1], [], []>} : vector<16x768xf32>, vector<768x128xf32>, vector<16x128xf32> -> vector<16x128xf32>
      %c0_23 = arith.constant 0 : index
      %c0_24 = arith.constant 0 : index
      %24 = vector.load %arg9[%c0_23, %c0_24] : memref<768x128xf32, #tpu.memory_space<vmem>>, vector<768x128xf32>
      %cst_25 = arith.constant dense<0.000000e+00> : vector<16x128xf32>
      %25 = tpu.matmul %21, %24, %cst_25 {dimension_numbers = #tpu.dot_dimension_numbers<[1], [0], [0], [1], [0, 0, 1, 1], [], []>} : vector<16x768xf32>, vector<768x128xf32>, vector<16x128xf32> -> vector<16x128xf32>
      %26 = arith.addf %23, %25 : vector<16x128xf32>
      %c0_26 = arith.constant 0 : index
      %c0_27 = arith.constant 0 : index
      %27 = vector.load %arg10[%c0_26, %c0_27] : memref<1x128xf32, #tpu.memory_space<vmem>>, vector<1x128xf32>
      %28 = vector.broadcast %27 : vector<1x128xf32> to vector<16x128xf32>
      %29 = arith.addf %26, %28 : vector<16x128xf32>
      %c0_28 = arith.constant 0 : index
      %c0_29 = arith.constant 0 : index
      %30 = vector.load %arg11[%c0_28, %c0_29] : memref<16x128xf32, #tpu.memory_space<vmem>>, vector<16x128xf32>
      tpu.vector_store %arg11[%c0_28, %c0_29], %29 {strides = array<i32>} : memref<16x128xf32, #tpu.memory_space<vmem>>, vector<16x128xf32>,
    } else {
    }
    return
  }
  func.func @transform_0(%arg0: i32, %arg1: i32) -> (i32, i32) {
    %c0_i32 = arith.constant 0 : i32
    return %arg0, %arg1 : i32, i32
  }
  func.func @transform_1(%arg0: i32, %arg1: i32) -> (i32, i32) {
    %c0_i32 = arith.constant 0 : i32
    %c0_i32_0 = arith.constant 0 : i32
    return %arg0, %c0_i32 : i32, i32
  }
  func.func @transform_2(%arg0: i32, %arg1: i32) -> (i32, i32) {
    %c0_i32 = arith.constant 0 : i32
    %c0_i32_0 = arith.constant 0 : i32
    return %arg1, %c0_i32 : i32, i32
  }
  func.func @transform_3(%arg0: i32, %arg1: i32) -> (i32, i32) {
    %c0_i32 = arith.constant 0 : i32
    %c0_i32_0 = arith.constant 0 : i32
    %c0_i32_1 = arith.constant 0 : i32
    return %c0_i32, %c0_i32_0 : i32, i32
  }
  func.func @transform_4(%arg0: i32, %arg1: i32) -> (i32, i32) {
    %c0_i32 = arith.constant 0 : i32
    %c0_i32_0 = arith.constant 0 : i32
    %c0_i32_1 = arith.constant 0 : i32
    return %c0_i32, %c0_i32_0 : i32, i32
  }
  func.func @transform_5(%arg0: i32, %arg1: i32) -> (i32, i32) {
    %c0_i32 = arith.constant 0 : i32
    %c0_i32_0 = arith.constant 0 : i32
    %c0_i32_1 = arith.constant 0 : i32
    return %c0_i32, %c0_i32_0 : i32, i32
  }
  func.func @transform_6(%arg0: i32, %arg1: i32) -> (i32, i32) {
    %c0_i32 = arith.constant 0 : i32
    %c0_i32_0 = arith.constant 0 : i32
    %c0_i32_1 = arith.constant 0 : i32
    return %c0_i32, %c0_i32_0 : i32, i32
  }
  func.func @transform_7(%arg0: i32, %arg1: i32) -> (i32, i32) {
    %c0_i32 = arith.constant 0 : i32
    %c0_i32_0 = arith.constant 0 : i32
    %c0_i32_1 = arith.constant 0 : i32
    return %c0_i32, %c0_i32_0 : i32, i32
  }
  func.func @transform_8(%arg0: i32, %arg1: i32) -> (i32, i32) {
    %c0_i32 = arith.constant 0 : i32
    %c0_i32_0 = arith.constant 0 : i32
    %c0_i32_1 = arith.constant 0 : i32
    return %c0_i32, %c0_i32_0 : i32, i32
  }
  func.func @transform_9(%arg0: i32, %arg1: i32) -> (i32, i32) {
    %c0_i32 = arith.constant 0 : i32
    %c0_i32_0 = arith.constant 0 : i32
    return %arg0, %c0_i32 : i32, i32
  }
}

</mosaic_0001>

<llo_original>
// kernel: tpu_custom_call.1
$region0: #{tpu_custom_call.1}
  #allocation0 [shape = 'u32[]', space=smem, size = 0x4, offset = 0x4, fixed_abs, tag = 'smem constant byte address 0x4 - core index']
  #allocation1 [shape = 'u32[72,128]{1,0:T(1,128)}', space=vmem, size = 0x9000, scoped, tag = 'internal scratch']
  #allocation2 [shape = 'f32[16,768]{1,0:T(8,128)}', space=vmem, size = 0xc000, scoped, tag = 'scratch operand']
  %s0 = inlined_call_operand.hbm [shape: bf16[16,768], index: 0, kind: input, shape index: {}]
  %s1 = inlined_call_operand.hbm [shape: f32[16,32], index: 1, kind: input, shape index: {}]
  %s2 = inlined_call_operand.hbm [shape: bf16[768,768], index: 2, kind: input, shape index: {}]
  %s3 = inlined_call_operand.hbm [shape: f32[1,768], index: 3, kind: input, shape index: {}]
  %s4 = inlined_call_operand.hbm [shape: f32[32,768], index: 4, kind: input, shape index: {}]
  %s5 = inlined_call_operand.hbm [shape: f32[1,768], index: 5, kind: input, shape index: {}]
  %s6 = inlined_call_operand.hbm [shape: f32[768,128], index: 6, kind: input, shape index: {}]
  %s7 = inlined_call_operand.hbm [shape: f32[768,128], index: 7, kind: input, shape index: {}]
  %s8 = inlined_call_operand.hbm [shape: f32[1,128], index: 8, kind: input, shape index: {}]
  %s9 = inlined_call_operand.hbm [shape: f32[16,128], index: 9, kind: output, shape index: {}]
  %s10 = sld [smem:[#allocation0]]
  $region113: #{tpu_custom_call.1} parent=0
    _
  %s12 = ssub.s32 1, %s10
  %s13 = scalar_select 0, %s12, %s10
  $region1: #{tpu_custom_call.1} parent=0
    #allocation3 [shape = 'u8[24576]{0}', space=vmem, size = 0x6000, scoped, tag = 'input window, operand 0']
    #allocation4 [shape = 's32[2]{0}', space=sflag, size = 0x8, scoped, tag = 'scoped memory for tpu_custom_call.1']
    #allocation5 [shape = 's32[2]{0}', space=sflag, size = 0x8, scoped, tag = 'scoped memory for tpu_custom_call.1']
    #allocation6 [shape = 'u8[8192]{0}', space=vmem, size = 0x2000, scoped, tag = 'input window, operand 1, single buffered']
    #allocation7 [shape = 's32[1]{0}', space=sflag, size = 0x4, scoped, tag = 'scoped memory for tpu_custom_call.1']
    #allocation8 [shape = 'u8[1179648]{0}', space=vmem, size = 0x120000, scoped, tag = 'input window, operand 2']
    #allocation9 [shape = 'u8[3072]{0}', space=vmem, size = 0xc00, scoped, tag = 'input window, operand 3, single buffered']
    #allocation10 [shape = 'u8[98304]{0}', space=vmem, size = 0x18000, scoped, tag = 'input window, operand 4, single buffered']
    #allocation11 [shape = 's32[1]{0}', space=sflag, size = 0x4, scoped, tag = 'scoped memory for tpu_custom_call.1']
    #allocation12 [shape = 'u8[3072]{0}', space=vmem, size = 0xc00, scoped, tag = 'input window, operand 5, single buffered']
    #allocation13 [shape = 'u8[393216]{0}', space=vmem, size = 0x60000, scoped, tag = 'input window, operand 6, single buffered']
    #allocation14 [shape = 's32[1]{0}', space=sflag, size = 0x4, scoped, tag = 'scoped memory for tpu_custom_call.1']
    #allocation15 [shape = 'u8[393216]{0}', space=vmem, size = 0x60000, scoped, tag = 'input window, operand 7, single buffered']
    #allocation16 [shape = 'u8[512]{0}', space=vmem, size = 0x400, scoped, tag = 'input window, operand 8, single buffered']
    #allocation17 [shape = 's32[1]{0}', space=sflag, size = 0x4, scoped, tag = 'scoped memory for tpu_custom_call.1']
    #allocation18 [shape = 'u8[8192]{0}', space=vmem, size = 0x2000, scoped, tag = 'output window, operand 0, single buffered']
    %14 = vsyncpa [#allocation4], 0
    %s15 = scalar_lea.sflag [#allocation4], 1
    %16 = vsyncpa %s15, 0
    %17 = vsyncpa [#allocation7], 0
    %18 = vsyncpa [#allocation11], 0
    %19 = vsyncpa [#allocation14], 0
    %20 = vsyncpa [#allocation17], 0
    %21 = vsyncpa [#allocation5], 0
    loop: start=0, step=1, limit=4
    $region2: #{tpu_custom_call.1} parent=1 // loop_pre_header
      _
    $region3: #{tpu_custom_call.1} parent=1 // loop_header
      %s23 = sphi 0, %s27
      %p24 = scmp.ge.s32.totalorder %s23, 4
      %s30 = sphi 0, %s42
      %s31 = sphi 0, %s38
      %s32 = sphi 0, %s30
      %s33 = sphi 0, %s31
      %s34 = sphi 0, %s32
      %s35 = sphi 0, %s33
      %s47 = sphi 0, %s49
      %s50 = sphi 0, %s47
      %s51 = sphi 0, %s50
      %s67 = sphi 0, %s51
      %s73 = sphi 0, %s75
      %s76 = sphi 0, %s73
      %s77 = sphi 0, %s76
      %s93 = sphi 0, %s77
      %s99 = sphi 0, %s101
      %s102 = sphi 0, %s99
      %s103 = sphi 0, %s102
      %s119 = sphi 0, %s103
      %s123 = sphi 0, %s123
      %s125 = sphi 0, %s123
      %s126 = sphi 0, %s125
      %s140 = sphi 0, %s126
      %s144 = sphi 0, %s144
      %s146 = sphi 0, %s144
      %s147 = sphi 0, %s146
      %s161 = sphi 0, %s147
      %s165 = sphi 0, %s165
      %s167 = sphi 0, %s165
      %s168 = sphi 0, %s167
      %s182 = sphi 0, %s168
      %s186 = sphi 0, %s186
      %s188 = sphi 0, %s186
      %s189 = sphi 0, %s188
      %s203 = sphi 0, %s189
      %s207 = sphi 0, %s207
      %s209 = sphi 0, %s207
      %s210 = sphi 0, %s209
      %s224 = sphi 0, %s210
      %s228 = sphi 0, %s228
      %s230 = sphi 0, %s228
      %s231 = sphi 0, %s230
      %s245 = sphi 0, %s231
      %s251 = sphi 0, %s253
      %s254 = sphi 0, %s251
      %s255 = sphi 0, %s254
      %s271 = sphi 0, %s255
    $region4: #{tpu_custom_call.1} parent=1 // loop_header_branch
      %26 = sbr.rel (%p24) target = $region8
    $region5: #{tpu_custom_call.1} parent=1 // loop_body
      %s28 = ssub.s32 %s23, 1
      %s29 = ssub.s32 %s23, 2
      %s36 = sadd.s32 1, %s31
      %p37 = scmp.ge.s32.totalorder %s36, 2
      %s38 = scalar_select %p37, 0, %s36
      %s39 = sadd.s32 1, %s30
      %s40 = scalar_select %p37, %s39, %s30
      %p41 = scmp.ge.s32.totalorder %s40, 1
      %s42 = scalar_select %p41, 0, %s40
      %s43 = ssub.s32 %s30, %s42
      %s44 = ssub.s32 %s31, %s38
      %s45 = sor.u32 %s43, %s44
      %p46 = scmp.eq.s32.totalorder %s45, 0
      %s48 = sadd.s32 %s47, 1
      %s49 = scalar_select %p46, %s47, %s48
      %p52 = pneg %p46
      %p53 = scmp.eq.s32.totalorder %s23, 1
      %p54 = por %p52, %p53
      %p55 = scmp.ne.s32.totalorder %s47, %s50
      %p56 = scmp.eq.s32.totalorder %s23, 0
      %p57 = por %p55, %p56
      %p58 = scmp.ne.s32.totalorder %s47, %s50
      %p59 = scmp.eq.s32.totalorder %s28, 1
      %p60 = por %p58, %p59
      %p61 = scmp.ne.s32.totalorder %s50, %s51
      %p62 = scmp.eq.s32.totalorder %s28, 0
      %p63 = por %p61, %p62
      %p64 = scmp.ne.s32.totalorder %s50, %s51
      %p65 = scmp.eq.s32.totalorder %s29, 1
      %p66 = por %p64, %p65
      %p68 = scmp.ne.s32.totalorder %s51, %s67
      %p69 = scmp.eq.s32.totalorder %s29, 0
      %p70 = por %p68, %p69
      %s71 = ssub.s32 %s30, %s42
      %p72 = scmp.eq.s32.totalorder %s71, 0
      %s74 = sadd.s32 %s73, 1
      %s75 = scalar_select %p72, %s73, %s74
      %p78 = pneg %p72
      %p79 = scmp.eq.s32.totalorder %s23, 1
      %p80 = por %p78, %p79
      %p81 = scmp.ne.s32.totalorder %s73, %s76
      %p82 = scmp.eq.s32.totalorder %s23, 0
      %p83 = por %p81, %p82
      %p84 = scmp.ne.s32.totalorder %s73, %s76
      %p85 = scmp.eq.s32.totalorder %s28, 1
      %p86 = por %p84, %p85
      %p87 = scmp.ne.s32.totalorder %s76, %s77
      %p88 = scmp.eq.s32.totalorder %s28, 0
      %p89 = por %p87, %p88
      %p90 = scmp.ne.s32.totalorder %s76, %s77
      %p91 = scmp.eq.s32.totalorder %s29, 1
      %p92 = por %p90, %p91
      %p94 = scmp.ne.s32.totalorder %s77, %s93
      %p95 = scmp.eq.s32.totalorder %s29, 0
      %p96 = por %p94, %p95
      %s97 = ssub.s32 %s31, %s38
      %p98 = scmp.eq.s32.totalorder %s97, 0
      %s100 = sadd.s32 %s99, 1
      %s101 = scalar_select %p98, %s99, %s100
      %p104 = pneg %p98
      %p105 = scmp.eq.s32.totalorder %s23, 1
      %p106 = por %p104, %p105
      %p107 = scmp.ne.s32.totalorder %s99, %s102
      %p108 = scmp.eq.s32.totalorder %s23, 0
      %p109 = por %p107, %p108
      %p110 = scmp.ne.s32.totalorder %s99, %s102
      %p111 = scmp.eq.s32.totalorder %s28, 1
      %p112 = por %p110, %p111
      %p113 = scmp.ne.s32.totalorder %s102, %s103
      %p114 = scmp.eq.s32.totalorder %s28, 0
      %p115 = por %p113, %p114
      %p116 = scmp.ne.s32.totalorder %s102, %s103
      %p117 = scmp.eq.s32.totalorder %s29, 1
      %p118 = por %p116, %p117
      %p120 = scmp.ne.s32.totalorder %s103, %s119
      %p121 = scmp.eq.s32.totalorder %s29, 0
      %p122 = por %p120, %p121
      %s124 = sadd.s32 %s123, 1
      %p127 = scmp.eq.s32.totalorder %s23, 1
      %p128 = scmp.ne.s32.totalorder %s123, %s125
      %p129 = scmp.eq.s32.totalorder %s23, 0
      %p130 = por %p128, %p129
      %p131 = scmp.ne.s32.totalorder %s123, %s125
      %p132 = scmp.eq.s32.totalorder %s28, 1
      %p133 = por %p131, %p132
      %p134 = scmp.ne.s32.totalorder %s125, %s126
      %p135 = scmp.eq.s32.totalorder %s28, 0
      %p136 = por %p134, %p135
      %p137 = scmp.ne.s32.totalorder %s125, %s126
      %p138 = scmp.eq.s32.totalorder %s29, 1
      %p139 = por %p137, %p138
      %p141 = scmp.ne.s32.totalorder %s126, %s140
      %p142 = scmp.eq.s32.totalorder %s29, 0
      %p143 = por %p141, %p142
      %s145 = sadd.s32 %s144, 1
      %p148 = scmp.eq.s32.totalorder %s23, 1
      %p149 = scmp.ne.s32.totalorder %s144, %s146
      %p150 = scmp.eq.s32.totalorder %s23, 0
      %p151 = por %p149, %p150
      %p152 = scmp.ne.s32.totalorder %s144, %s146
      %p153 = scmp.eq.s32.totalorder %s28, 1
      %p154 = por %p152, %p153
      %p155 = scmp.ne.s32.totalorder %s146, %s147
      %p156 = scmp.eq.s32.totalorder %s28, 0
      %p157 = por %p155, %p156
      %p158 = scmp.ne.s32.totalorder %s146, %s147
      %p159 = scmp.eq.s32.totalorder %s29, 1
      %p160 = por %p158, %p159
      %p162 = scmp.ne.s32.totalorder %s147, %s161
      %p163 = scmp.eq.s32.totalorder %s29, 0
      %p164 = por %p162, %p163
      %s166 = sadd.s32 %s165, 1
      %p169 = scmp.eq.s32.totalorder %s23, 1
      %p170 = scmp.ne.s32.totalorder %s165, %s167
      %p171 = scmp.eq.s32.totalorder %s23, 0
      %p172 = por %p170, %p171
      %p173 = scmp.ne.s32.totalorder %s165, %s167
      %p174 = scmp.eq.s32.totalorder %s28, 1
      %p175 = por %p173, %p174
      %p176 = scmp.ne.s32.totalorder %s167, %s168
      %p177 = scmp.eq.s32.totalorder %s28, 0
      %p178 = por %p176, %p177
      %p179 = scmp.ne.s32.totalorder %s167, %s168
      %p180 = scmp.eq.s32.totalorder %s29, 1
      %p181 = por %p179, %p180
      %p183 = scmp.ne.s32.totalorder %s168, %s182
      %p184 = scmp.eq.s32.totalorder %s29, 0
      %p185 = por %p183, %p184
      %s187 = sadd.s32 %s186, 1
      %p190 = scmp.eq.s32.totalorder %s23, 1
      %p191 = scmp.ne.s32.totalorder %s186, %s188
      %p192 = scmp.eq.s32.totalorder %s23, 0
      %p193 = por %p191, %p192
      %p194 = scmp.ne.s32.totalorder %s186, %s188
      %p195 = scmp.eq.s32.totalorder %s28, 1
      %p196 = por %p194, %p195
      %p197 = scmp.ne.s32.totalorder %s188, %s189
      %p198 = scmp.eq.s32.totalorder %s28, 0
      %p199 = por %p197, %p198
      %p200 = scmp.ne.s32.totalorder %s188, %s189
      %p201 = scmp.eq.s32.totalorder %s29, 1
      %p202 = por %p200, %p201
      %p204 = scmp.ne.s32.totalorder %s189, %s203
      %p205 = scmp.eq.s32.totalorder %s29, 0
      %p206 = por %p204, %p205
      %s208 = sadd.s32 %s207, 1
      %p211 = scmp.eq.s32.totalorder %s23, 1
      %p212 = scmp.ne.s32.totalorder %s207, %s209
      %p213 = scmp.eq.s32.totalorder %s23, 0
      %p214 = por %p212, %p213
      %p215 = scmp.ne.s32.totalorder %s207, %s209
      %p216 = scmp.eq.s32.totalorder %s28, 1
      %p217 = por %p215, %p216
      %p218 = scmp.ne.s32.totalorder %s209, %s210
      %p219 = scmp.eq.s32.totalorder %s28, 0
      %p220 = por %p218, %p219
      %p221 = scmp.ne.s32.totalorder %s209, %s210
      %p222 = scmp.eq.s32.totalorder %s29, 1
      %p223 = por %p221, %p222
      %p225 = scmp.ne.s32.totalorder %s210, %s224
      %p226 = scmp.eq.s32.totalorder %s29, 0
      %p227 = por %p225, %p226
      %s229 = sadd.s32 %s228, 1
      %p232 = scmp.eq.s32.totalorder %s23, 1
      %p233 = scmp.ne.s32.totalorder %s228, %s230
      %p234 = scmp.eq.s32.totalorder %s23, 0
      %p235 = por %p233, %p234
      %p236 = scmp.ne.s32.totalorder %s228, %s230
      %p237 = scmp.eq.s32.totalorder %s28, 1
      %p238 = por %p236, %p237
      %p239 = scmp.ne.s32.totalorder %s230, %s231
      %p240 = scmp.eq.s32.totalorder %s28, 0
      %p241 = por %p239, %p240
      %p242 = scmp.ne.s32.totalorder %s230, %s231
      %p243 = scmp.eq.s32.totalorder %s29, 1
      %p244 = por %p242, %p243
      %p246 = scmp.ne.s32.totalorder %s231, %s245
      %p247 = scmp.eq.s32.totalorder %s29, 0
      %p248 = por %p246, %p247
      %s249 = ssub.s32 %s30, %s42
      %p250 = scmp.eq.s32.totalorder %s249, 0
      %s252 = sadd.s32 %s251, 1
      %s253 = scalar_select %p250, %s251, %s252
      %p256 = pneg %p250
      %p257 = scmp.eq.s32.totalorder %s23, 1
      %p258 = por %p256, %p257
      %p259 = scmp.ne.s32.totalorder %s251, %s254
      %p260 = scmp.eq.s32.totalorder %s23, 0
      %p261 = por %p259, %p260
      %p262 = scmp.ne.s32.totalorder %s251, %s254
      %p263 = scmp.eq.s32.totalorder %s28, 1
      %p264 = por %p262, %p263
      %p265 = scmp.ne.s32.totalorder %s254, %s255
      %p266 = scmp.eq.s32.totalorder %s28, 0
      %p267 = por %p265, %p266
      %p268 = scmp.ne.s32.totalorder %s254, %s255
      %p269 = scmp.eq.s32.totalorder %s29, 1
      %p270 = por %p268, %p269
      %p272 = scmp.ne.s32.totalorder %s255, %s271
      %p273 = scmp.eq.s32.totalorder %s29, 0
      %p274 = por %p272, %p273
      %p275 = scmp.le.s32.totalorder 1, %s23
      %p276 = scmp.lt.s32.totalorder %s23, 3
      %p277 = pnand %p275, %p276
      %p278 = pneg %p277
      // Predicated region
      $region9: #{tpu_custom_call.1} parent=5 // pred_check
        _
      $region10: #{tpu_custom_call.1} parent=5 // pred_check_branch
        %280 = sbr.rel (%p277) target = $region12
      $region11: #{tpu_custom_call.1} parent=5 // pred_region
        %s281 = ssub.s32 %s23, 1
        // Predicated region
        $region13: #{tpu_custom_call.1} parent=11 // pred_check
          %p282 = pneg %p89
        $region14: #{tpu_custom_call.1} parent=11 // pred_check_branch
          %284 = sbr.rel (%p282) target = $region16
        $region15: #{tpu_custom_call.1} parent=11 // pred_region
          %s285 = smul.u32 2, %s32
          %287 = vsyncadd [#allocation7], 0
          %s288 = smul.addr %s285, 8
          %s289 = scalar_lea.hbm %s1, %s288
          %s290 = sshll.u32 %s289, 4
          %s291 = int_to_ptr.hbm [resolvable:$true] %s290
          %s292 = sshll.u32 [#allocation6], 4
          %s293 = int_to_ptr.vmem [resolvable:$true] %s292
          %298 = dma.hbm_to_vmem [thread:$0]  %s291, 256, %s293, [#allocation7], 128, 128, 8
        $region16: #{tpu_custom_call.1} parent=11 // pred_fallthru
          _
        // Predicated region
        $region17: #{tpu_custom_call.1} parent=11 // pred_check
          %p299 = pneg %p136
        $region18: #{tpu_custom_call.1} parent=11 // pred_check_branch
          %301 = sbr.rel (%p299) target = $region20
        $region19: #{tpu_custom_call.1} parent=11 // pred_region
          %303 = vsyncadd [#allocation7], 0
          %s305 = sshll.u32 %s3, 4
          %s306 = int_to_ptr.hbm [resolvable:$true] %s305
          %s307 = sshll.u32 [#allocation9], 4
          %s308 = int_to_ptr.vmem [resolvable:$true] %s307
          %310 = dma.hbm_to_vmem [thread:$0]  %s306, 96, %s308, [#allocation7]
        $region20: #{tpu_custom_call.1} parent=11 // pred_fallthru
          _
        // Predicated region
        $region21: #{tpu_custom_call.1} parent=11 // pred_check
          %p311 = pneg %p157
        $region22: #{tpu_custom_call.1} parent=11 // pred_check_branch
          %313 = sbr.rel (%p311) target = $region24
        $region23: #{tpu_custom_call.1} parent=11 // pred_region
          %315 = vsyncadd [#allocation11], 0
          %s316 = sshll.u32 %s4, 4
          %s317 = int_to_ptr.hbm [resolvable:$true] %s316
          %s318 = sshll.u32 [#allocation10], 4
          %s319 = int_to_ptr.vmem [resolvable:$true] %s318
          %324 = dma.hbm_to_vmem [thread:$0]  %s317, 3072, %s319, [#allocation11], 768, 768, 48
        $region24: #{tpu_custom_call.1} parent=11 // pred_fallthru
          _
        // Predicated region
        $region25: #{tpu_custom_call.1} parent=11 // pred_check
          %p325 = pneg %p178
        $region26: #{tpu_custom_call.1} parent=11 // pred_check_branch
          %327 = sbr.rel (%p325) target = $region28
        $region27: #{tpu_custom_call.1} parent=11 // pred_region
          %329 = vsyncadd [#allocation11], 0
          %s331 = sshll.u32 %s5, 4
          %s332 = int_to_ptr.hbm [resolvable:$true] %s331
          %s333 = sshll.u32 [#allocation12], 4
          %s334 = int_to_ptr.vmem [resolvable:$true] %s333
          %336 = dma.hbm_to_vmem [thread:$0]  %s332, 96, %s334, [#allocation11]
        $region28: #{tpu_custom_call.1} parent=11 // pred_fallthru
          _
        // Predicated region
        $region29: #{tpu_custom_call.1} parent=11 // pred_check
          %p337 = pneg %p199
        $region30: #{tpu_custom_call.1} parent=11 // pred_check_branch
          %339 = sbr.rel (%p337) target = $region32
        $region31: #{tpu_custom_call.1} parent=11 // pred_region
          %341 = vsyncadd [#allocation14], 0
          %s342 = sshll.u32 %s6, 4
          %s343 = int_to_ptr.hbm [resolvable:$true] %s342
          %s344 = sshll.u32 [#allocation13], 4
          %s345 = int_to_ptr.vmem [resolvable:$true] %s344
          %350 = dma.hbm_to_vmem [thread:$0]  %s343, 12288, %s345, [#allocation14], 128, 128, 8
        $region32: #{tpu_custom_call.1} parent=11 // pred_fallthru
          _
        // Predicated region
        $region33: #{tpu_custom_call.1} parent=11 // pred_check
          %p351 = pneg %p220
        $region34: #{tpu_custom_call.1} parent=11 // pred_check_branch
          %353 = sbr.rel (%p351) target = $region36
        $region35: #{tpu_custom_call.1} parent=11 // pred_region
          %355 = vsyncadd [#allocation14], 0
          %s356 = sshll.u32 %s7, 4
          %s357 = int_to_ptr.hbm [resolvable:$true] %s356
          %s358 = sshll.u32 [#allocation15], 4
          %s359 = int_to_ptr.vmem [resolvable:$true] %s358
          %364 = dma.hbm_to_vmem [thread:$0]  %s357, 12288, %s359, [#allocation14], 128, 128, 8
        $region36: #{tpu_custom_call.1} parent=11 // pred_fallthru
          _
        // Predicated region
        $region37: #{tpu_custom_call.1} parent=11 // pred_check
          %p365 = pneg %p241
        $region38: #{tpu_custom_call.1} parent=11 // pred_check_branch
          %367 = sbr.rel (%p365) target = $region40
        $region39: #{tpu_custom_call.1} parent=11 // pred_region
          %369 = vsyncadd [#allocation17], 0
          %s371 = sshll.u32 %s8, 4
          %s372 = int_to_ptr.hbm [resolvable:$true] %s371
          %s373 = sshll.u32 [#allocation16], 4
          %s374 = int_to_ptr.vmem [resolvable:$true] %s373
          %376 = dma.hbm_to_vmem [thread:$0]  %s372, 16, %s374, [#allocation17]
        $region40: #{tpu_custom_call.1} parent=11 // pred_fallthru
          _
      $region12: #{tpu_custom_call.1} parent=5 // pred_fallthru
        _
      %p377 = scmp.lt.s32.totalorder %s23, 2
      // Predicated region
      $region41: #{tpu_custom_call.1} parent=5 // pred_check
        %p378 = pneg %p377
      $region42: #{tpu_custom_call.1} parent=5 // pred_check_branch
        %380 = sbr.rel (%p378) target = $region44
      $region43: #{tpu_custom_call.1} parent=5 // pred_region
        // Predicated region
        $region45: #{tpu_custom_call.1} parent=43 // pred_check
          %p381 = pneg %p57
        $region46: #{tpu_custom_call.1} parent=43 // pred_check_branch
          %383 = sbr.rel (%p381) target = $region48
        $region47: #{tpu_custom_call.1} parent=43 // pred_region
          %s384 = sand.u32 %s23, 1
          %s385 = scalar_lea.sflag [#allocation4], %s384
          %s386 = sand.u32 %s47, 1
          %s387 = smul.addr %s386, 24
          %s388 = scalar_lea.vmem [#allocation3], %s387
          %s389 = smul.u32 2, %s30
          %s390 = smul.u32 3, %s31
          %392 = vsyncadd %s385, 0
          %s393 = smul.addr %s389, 6
          %s394 = sadd.s32 %s390, %s393
          %s395 = smul.addr %s394, 4
          %s396 = scalar_lea.hbm %s0, %s395
          %s397 = sshll.u32 %s396, 4
          %s398 = int_to_ptr.hbm [resolvable:$true] %s397
          %s399 = sshll.u32 %s388, 4
          %s400 = int_to_ptr.vmem [resolvable:$true] %s399
          %405 = dma.hbm_to_vmem [thread:$0]  %s398, 384, %s400, %s385, 384, 192, 12
        $region48: #{tpu_custom_call.1} parent=43 // pred_fallthru
          _
        // Predicated region
        $region49: #{tpu_custom_call.1} parent=43 // pred_check
          %p406 = pneg %p109
        $region50: #{tpu_custom_call.1} parent=43 // pred_check_branch
          %408 = sbr.rel (%p406) target = $region52
        $region51: #{tpu_custom_call.1} parent=43 // pred_region
          %s409 = sand.u32 %s23, 1
          %s410 = scalar_lea.sflag [#allocation4], %s409
          %s411 = sand.u32 %s99, 1
          %s412 = smul.addr %s411, 1152
          %s413 = scalar_lea.vmem [#allocation8], %s412
          %s414 = smul.u32 48, %s31
          %416 = vsyncadd %s410, 0
          %s417 = smul.addr %s414, 6
          %s418 = smul.addr %s417, 4
          %s419 = scalar_lea.hbm %s2, %s418
          %s420 = sshll.u32 %s419, 4
          %s421 = int_to_ptr.hbm [resolvable:$true] %s420
          %s422 = sshll.u32 %s413, 4
          %s423 = int_to_ptr.vmem [resolvable:$true] %s422
          %428 = dma.hbm_to_vmem [thread:$0]  %s421, 18432, %s423, %s410, 384, 384, 24
        $region52: #{tpu_custom_call.1} parent=43 // pred_fallthru
          _
      $region44: #{tpu_custom_call.1} parent=5 // pred_fallthru
        _
      %p429 = scmp.le.s32.totalorder 1, %s23
      %p430 = scmp.lt.s32.totalorder %s23, 3
      %p431 = pnand %p429, %p430
      %p432 = pneg %p431
      // Predicated region
      $region53: #{tpu_custom_call.1} parent=5 // pred_check
        _
      $region54: #{tpu_custom_call.1} parent=5 // pred_check_branch
        %434 = sbr.rel (%p431) target = $region56
      $region55: #{tpu_custom_call.1} parent=5 // pred_region
        %s435 = ssub.s32 %s23, 1
        %s436 = sand.u32 %s28, 1
        %s437 = scalar_lea.sflag [#allocation4], %s436
        %s438 = sand.u32 %s50, 1
        %s439 = smul.addr %s438, 24
        %s440 = scalar_lea.vmem [#allocation3], %s439
        // Predicated region
        $region57: #{tpu_custom_call.1} parent=55 // pred_check
          %p441 = pneg %p63
        $region58: #{tpu_custom_call.1} parent=55 // pred_check_branch
          %443 = sbr.rel (%p441) target = $region60
        $region59: #{tpu_custom_call.1} parent=55 // pred_region
          %445 = dma.done %s437, 384
        $region60: #{tpu_custom_call.1} parent=55 // pred_fallthru
          _
        // Predicated region
        $region61: #{tpu_custom_call.1} parent=55 // pred_check
          %p446 = pneg %p89
        $region62: #{tpu_custom_call.1} parent=55 // pred_check_branch
          %448 = sbr.rel (%p446) target = $region64
        $region63: #{tpu_custom_call.1} parent=55 // pred_region
          %450 = dma.done [#allocation7], 256
        $region64: #{tpu_custom_call.1} parent=55 // pred_fallthru
          _
        %s451 = sand.u32 %s28, 1
        %s452 = scalar_lea.sflag [#allocation4], %s451
        %s453 = sand.u32 %s102, 1
        %s454 = smul.addr %s453, 1152
        %s455 = scalar_lea.vmem [#allocation8], %s454
        // Predicated region
        $region65: #{tpu_custom_call.1} parent=55 // pred_check
          %p456 = pneg %p115
        $region66: #{tpu_custom_call.1} parent=55 // pred_check_branch
          %458 = sbr.rel (%p456) target = $region68
        $region67: #{tpu_custom_call.1} parent=55 // pred_region
          %460 = dma.done %s452, 18432
        $region68: #{tpu_custom_call.1} parent=55 // pred_fallthru
          _
        // Predicated region
        $region69: #{tpu_custom_call.1} parent=55 // pred_check
          %p461 = pneg %p136
        $region70: #{tpu_custom_call.1} parent=55 // pred_check_branch
          %463 = sbr.rel (%p461) target = $region72
        $region71: #{tpu_custom_call.1} parent=55 // pred_region
          %465 = dma.done [#allocation7], 96
        $region72: #{tpu_custom_call.1} parent=55 // pred_fallthru
          _
        // Predicated region
        $region73: #{tpu_custom_call.1} parent=55 // pred_check
          %p466 = pneg %p157
        $region74: #{tpu_custom_call.1} parent=55 // pred_check_branch
          %468 = sbr.rel (%p466) target = $region76
        $region75: #{tpu_custom_call.1} parent=55 // pred_region
          %470 = dma.done [#allocation11], 3072
        $region76: #{tpu_custom_call.1} parent=55 // pred_fallthru
          _
        // Predicated region
        $region77: #{tpu_custom_call.1} parent=55 // pred_check
          %p471 = pneg %p178
        $region78: #{tpu_custom_call.1} parent=55 // pred_check_branch
          %473 = sbr.rel (%p471) target = $region80
        $region79: #{tpu_custom_call.1} parent=55 // pred_region
          %475 = dma.done [#allocation11], 96
        $region80: #{tpu_custom_call.1} parent=55 // pred_fallthru
          _
        // Predicated region
        $region81: #{tpu_custom_call.1} parent=55 // pred_check
          %p476 = pneg %p199
        $region82: #{tpu_custom_call.1} parent=55 // pred_check_branch
          %478 = sbr.rel (%p476) target = $region84
        $region83: #{tpu_custom_call.1} parent=55 // pred_region
          %480 = dma.done [#allocation14], 12288
        $region84: #{tpu_custom_call.1} parent=55 // pred_fallthru
          _
        // Predicated region
        $region85: #{tpu_custom_call.1} parent=55 // pred_check
          %p481 = pneg %p220
        $region86: #{tpu_custom_call.1} parent=55 // pred_check_branch
          %483 = sbr.rel (%p481) target = $region88
        $region87: #{tpu_custom_call.1} parent=55 // pred_region
          %485 = dma.done [#allocation14], 12288
        $region88: #{tpu_custom_call.1} parent=55 // pred_fallthru
          _
        // Predicated region
        $region89: #{tpu_custom_call.1} parent=55 // pred_check
          %p486 = pneg %p241
        $region90: #{tpu_custom_call.1} parent=55 // pred_check_branch
          %488 = sbr.rel (%p486) target = $region92
        $region91: #{tpu_custom_call.1} parent=55 // pred_region
          %490 = dma.done [#allocation17], 16
        $region92: #{tpu_custom_call.1} parent=55 // pred_fallthru
          _
        %s491 = sand.u32 %s28, 1
        %s492 = scalar_lea.sflag [#allocation4], %s491
        %s493 = sand.u32 %s50, 1
        %s494 = smul.addr %s493, 24
        %s495 = scalar_lea.vmem [#allocation3], %s494
        %p496 = pneg %p63
        %p497 = pneg %p60
        %p498 = pneg %p89
        %p499 = pneg %p86
        %s500 = sand.u32 %s28, 1
        %s501 = scalar_lea.sflag [#allocation4], %s500
        %s502 = sand.u32 %s102, 1
        %s503 = smul.addr %s502, 1152
        %s504 = scalar_lea.vmem [#allocation8], %s503
        %p505 = pneg %p115
        %p506 = pneg %p112
        %p507 = pneg %p136
        %p508 = pneg %p133
        %p509 = pneg %p157
        %p510 = pneg %p154
        %p511 = pneg %p178
        %p512 = pneg %p175
        %p513 = pneg %p199
        %p514 = pneg %p196
        %p515 = pneg %p220
        %p516 = pneg %p217
        %p517 = pneg %p241
        %p518 = pneg %p238
        %p519 = pneg %p267
        %p520 = pneg %p264
        %s521 = smul.u32 2, %s32
        %s522 = smul.u32 3, %s33
        %s523 = smul.u32 2, %s32
        %s524 = smul.u32 48, %s33
        %s525 = smul.u32 2, %s32
        %p526 = scmp.eq.s32.totalorder %s33, 0
        // Predicated region
        $region93: #{tpu_custom_call.1} parent=55 // pred_check
          %p527 = pneg %p526
        $region94: #{tpu_custom_call.1} parent=55 // pred_check_branch
          %529 = sbr.rel (%p527) target = $region96
        $region95: #{tpu_custom_call.1} parent=55 // pred_region
          %530 = vst [vmem:[#allocation2] sm:$0xff] 0.0
          %531 = vst [vmem:[#allocation2 + $0x8] sm:$0xff] 0.0
          %532 = vst [vmem:[#allocation2 + $0x10] sm:$0xff] 0.0
          %533 = vst [vmem:[#allocation2 + $0x18] sm:$0xff] 0.0
          %534 = vst [vmem:[#allocation2 + $0x20] sm:$0xff] 0.0
          %535 = vst [vmem:[#allocation2 + $0x28] sm:$0xff] 0.0
          %536 = vst [vmem:[#allocation2 + $0x30] sm:$0xff] 0.0
          %537 = vst [vmem:[#allocation2 + $0x38] sm:$0xff] 0.0
          %538 = vst [vmem:[#allocation2 + $0x40] sm:$0xff] 0.0
          %539 = vst [vmem:[#allocation2 + $0x48] sm:$0xff] 0.0
          %540 = vst [vmem:[#allocation2 + $0x50] sm:$0xff] 0.0
          %541 = vst [vmem:[#allocation2 + $0x58] sm:$0xff] 0.0
        $region96: #{tpu_custom_call.1} parent=55 // pred_fallthru
          _
        %v542 = vld [vmem:[#allocation2] sm:$0xff]
        %v543 = vld [vmem:[#allocation2 + $0x8] sm:$0xff]
        %v544 = vld [vmem:[#allocation2 + $0x10] sm:$0xff]
        %v545 = vld [vmem:[#allocation2 + $0x18] sm:$0xff]
        %v546 = vld [vmem:[#allocation2 + $0x20] sm:$0xff]
        %v547 = vld [vmem:[#allocation2 + $0x28] sm:$0xff]
        %v548 = vld [vmem:[#allocation2 + $0x30] sm:$0xff]
        %v549 = vld [vmem:[#allocation2 + $0x38] sm:$0xff]
        %v550 = vld [vmem:[#allocation2 + $0x40] sm:$0xff]
        %v551 = vld [vmem:[#allocation2 + $0x48] sm:$0xff]
        %v552 = vld [vmem:[#allocation2 + $0x50] sm:$0xff]
        %v553 = vld [vmem:[#allocation2 + $0x58] sm:$0xff]
        %v554 = vld [vmem:[%s440] sm:$0xff]
        %v555 = vld [vmem:[%s440 + $0x8] sm:$0xf]
        %v556 = vld [vmem:[%s440 + $0xc] sm:$0xff]
        %v557 = vld [vmem:[%s440 + $0x14] sm:$0xf]
        %v558 = vld [vmem:[%s455] sm:$0xff]
        %v559 = vld [vmem:[%s455 + $0x8] sm:$0xff]
        %v560 = vld [vmem:[%s455 + $0x10] sm:$0xff]
        %v561 = vld [vmem:[%s455 + $0x18] sm:$0xff]
        %v562 = vld [vmem:[%s455 + $0x20] sm:$0xff]
        %v563 = vld [vmem:[%s455 + $0x28] sm:$0xff]
        %v564 = vld [vmem:[%s455 + $0x30] sm:$0xff]
        %v565 = vld [vmem:[%s455 + $0x38] sm:$0xff]
        %v566 = vld [vmem:[%s455 + $0x40] sm:$0xff]
        %v567 = vld [vmem:[%s455 + $0x48] sm:$0xff]
        %v568 = vld [vmem:[%s455 + $0x50] sm:$0xff]
        %v569 = vld [vmem:[%s455 + $0x58] sm:$0xff]
        %v570 = vld [vmem:[%s455 + $0x60] sm:$0xff]
        %v571 = vld [vmem:[%s455 + $0x68] sm:$0xff]
        %v572 = vld [vmem:[%s455 + $0x70] sm:$0xff]
        %v573 = vld [vmem:[%s455 + $0x78] sm:$0xff]
        %v574 = vld [vmem:[%s455 + $0x80] sm:$0xff]
        %v575 = vld [vmem:[%s455 + $0x88] sm:$0xff]
        %v576 = vld [vmem:[%s455 + $0x90] sm:$0xff]
        %v577 = vld [vmem:[%s455 + $0x98] sm:$0xff]
        %v578 = vld [vmem:[%s455 + $0xa0] sm:$0xff]
        %v579 = vld [vmem:[%s455 + $0xa8] sm:$0xff]
        %v580 = vld [vmem:[%s455 + $0xb0] sm:$0xff]
        %v581 = vld [vmem:[%s455 + $0xb8] sm:$0xff]
        %v582 = vld [vmem:[%s455 + $0xc0] sm:$0xff]
        %v583 = vld [vmem:[%s455 + $0xc8] sm:$0xff]
        %v584 = vld [vmem:[%s455 + $0xd0] sm:$0xff]
        %v585 = vld [vmem:[%s455 + $0xd8] sm:$0xff]
        %v586 = vld [vmem:[%s455 + $0xe0] sm:$0xff]
        %v587 = vld [vmem:[%s455 + $0xe8] sm:$0xff]
        %v588 = vld [vmem:[%s455 + $0xf0] sm:$0xff]
        %v589 = vld [vmem:[%s455 + $0xf8] sm:$0xff]
        %v590 = vld [vmem:[%s455 + $0x100] sm:$0xff]
        %v591 = vld [vmem:[%s455 + $0x108] sm:$0xff]
        %v592 = vld [vmem:[%s455 + $0x110] sm:$0xff]
        %v593 = vld [vmem:[%s455 + $0x118] sm:$0xff]
        %v594 = vld [vmem:[%s455 + $0x120] sm:$0xff]
        %v595 = vld [vmem:[%s455 + $0x128] sm:$0xff]
        %v596 = vld [vmem:[%s455 + $0x130] sm:$0xff]
        %v597 = vld [vmem:[%s455 + $0x138] sm:$0xff]
        %v598 = vld [vmem:[%s455 + $0x140] sm:$0xff]
        %v599 = vld [vmem:[%s455 + $0x148] sm:$0xff]
        %v600 = vld [vmem:[%s455 + $0x150] sm:$0xff]
        %v601 = vld [vmem:[%s455 + $0x158] sm:$0xff]
        %v602 = vld [vmem:[%s455 + $0x160] sm:$0xff]
        %v603 = vld [vmem:[%s455 + $0x168] sm:$0xff]
        %v604 = vld [vmem:[%s455 + $0x170] sm:$0xff]
        %v605 = vld [vmem:[%s455 + $0x178] sm:$0xff]
        %v606 = vld [vmem:[%s455 + $0x180] sm:$0xff]
        %v607 = vld [vmem:[%s455 + $0x188] sm:$0xff]
        %v608 = vld [vmem:[%s455 + $0x190] sm:$0xff]
        %v609 = vld [vmem:[%s455 + $0x198] sm:$0xff]
        %v610 = vld [vmem:[%s455 + $0x1a0] sm:$0xff]
        %v611 = vld [vmem:[%s455 + $0x1a8] sm:$0xff]
        %v612 = vld [vmem:[%s455 + $0x1b0] sm:$0xff]
        %v613 = vld [vmem:[%s455 + $0x1b8] sm:$0xff]
        %v614 = vld [vmem:[%s455 + $0x1c0] sm:$0xff]
        %v615 = vld [vmem:[%s455 + $0x1c8] sm:$0xff]
        %v616 = vld [vmem:[%s455 + $0x1d0] sm:$0xff]
        %v617 = vld [vmem:[%s455 + $0x1d8] sm:$0xff]
        %v618 = vld [vmem:[%s455 + $0x1e0] sm:$0xff]
        %v619 = vld [vmem:[%s455 + $0x1e8] sm:$0xff]
        %v620 = vld [vmem:[%s455 + $0x1f0] sm:$0xff]
        %v621 = vld [vmem:[%s455 + $0x1f8] sm:$0xff]
        %v622 = vld [vmem:[%s455 + $0x200] sm:$0xff]
        %v623 = vld [vmem:[%s455 + $0x208] sm:$0xff]
        %v624 = vld [vmem:[%s455 + $0x210] sm:$0xff]
        %v625 = vld [vmem:[%s455 + $0x218] sm:$0xff]
        %v626 = vld [vmem:[%s455 + $0x220] sm:$0xff]
        %v627 = vld [vmem:[%s455 + $0x228] sm:$0xff]
        %v628 = vld [vmem:[%s455 + $0x230] sm:$0xff]
        %v629 = vld [vmem:[%s455 + $0x238] sm:$0xff]
        %v630 = vld [vmem:[%s455 + $0x240] sm:$0xff]
        %v631 = vld [vmem:[%s455 + $0x248] sm:$0xff]
        %v632 = vld [vmem:[%s455 + $0x250] sm:$0xff]
        %v633 = vld [vmem:[%s455 + $0x258] sm:$0xff]
        %v634 = vld [vmem:[%s455 + $0x260] sm:$0xff]
        %v635 = vld [vmem:[%s455 + $0x268] sm:$0xff]
        %v636 = vld [vmem:[%s455 + $0x270] sm:$0xff]
        %v637 = vld [vmem:[%s455 + $0x278] sm:$0xff]
        %v638 = vld [vmem:[%s455 + $0x280] sm:$0xff]
        %v639 = vld [vmem:[%s455 + $0x288] sm:$0xff]
        %v640 = vld [vmem:[%s455 + $0x290] sm:$0xff]
        %v641 = vld [vmem:[%s455 + $0x298] sm:$0xff]
        %v642 = vld [vmem:[%s455 + $0x2a0] sm:$0xff]
        %v643 = vld [vmem:[%s455 + $0x2a8] sm:$0xff]
        %v644 = vld [vmem:[%s455 + $0x2b0] sm:$0xff]
        %v645 = vld [vmem:[%s455 + $0x2b8] sm:$0xff]
        %v646 = vld [vmem:[%s455 + $0x2c0] sm:$0xff]
        %v647 = vld [vmem:[%s455 + $0x2c8] sm:$0xff]
        %v648 = vld [vmem:[%s455 + $0x2d0] sm:$0xff]
        %v649 = vld [vmem:[%s455 + $0x2d8] sm:$0xff]
        %v650 = vld [vmem:[%s455 + $0x2e0] sm:$0xff]
        %v651 = vld [vmem:[%s455 + $0x2e8] sm:$0xff]
        %v652 = vld [vmem:[%s455 + $0x2f0] sm:$0xff]
        %v653 = vld [vmem:[%s455 + $0x2f8] sm:$0xff]
        %v654 = vld [vmem:[%s455 + $0x300] sm:$0xff]
        %v655 = vld [vmem:[%s455 + $0x308] sm:$0xff]
        %v656 = vld [vmem:[%s455 + $0x310] sm:$0xff]
        %v657 = vld [vmem:[%s455 + $0x318] sm:$0xff]
        %v658 = vld [vmem:[%s455 + $0x320] sm:$0xff]
        %v659 = vld [vmem:[%s455 + $0x328] sm:$0xff]
        %v660 = vld [vmem:[%s455 + $0x330] sm:$0xff]
        %v661 = vld [vmem:[%s455 + $0x338] sm:$0xff]
        %v662 = vld [vmem:[%s455 + $0x340] sm:$0xff]
        %v663 = vld [vmem:[%s455 + $0x348] sm:$0xff]
        %v664 = vld [vmem:[%s455 + $0x350] sm:$0xff]
        %v665 = vld [vmem:[%s455 + $0x358] sm:$0xff]
        %v666 = vld [vmem:[%s455 + $0x360] sm:$0xff]
        %v667 = vld [vmem:[%s455 + $0x368] sm:$0xff]
        %v668 = vld [vmem:[%s455 + $0x370] sm:$0xff]
        %v669 = vld [vmem:[%s455 + $0x378] sm:$0xff]
        %v670 = vld [vmem:[%s455 + $0x380] sm:$0xff]
        %v671 = vld [vmem:[%s455 + $0x388] sm:$0xff]
        %v672 = vld [vmem:[%s455 + $0x390] sm:$0xff]
        %v673 = vld [vmem:[%s455 + $0x398] sm:$0xff]
        %v674 = vld [vmem:[%s455 + $0x3a0] sm:$0xff]
        %v675 = vld [vmem:[%s455 + $0x3a8] sm:$0xff]
        %v676 = vld [vmem:[%s455 + $0x3b0] sm:$0xff]
        %v677 = vld [vmem:[%s455 + $0x3b8] sm:$0xff]
        %v678 = vld [vmem:[%s455 + $0x3c0] sm:$0xff]
        %v679 = vld [vmem:[%s455 + $0x3c8] sm:$0xff]
        %v680 = vld [vmem:[%s455 + $0x3d0] sm:$0xff]
        %v681 = vld [vmem:[%s455 + $0x3d8] sm:$0xff]
        %v682 = vld [vmem:[%s455 + $0x3e0] sm:$0xff]
        %v683 = vld [vmem:[%s455 + $0x3e8] sm:$0xff]
        %v684 = vld [vmem:[%s455 + $0x3f0] sm:$0xff]
        %v685 = vld [vmem:[%s455 + $0x3f8] sm:$0xff]
        %v686 = vld [vmem:[%s455 + $0x400] sm:$0xff]
        %v687 = vld [vmem:[%s455 + $0x408] sm:$0xff]
        %v688 = vld [vmem:[%s455 + $0x410] sm:$0xff]
        %v689 = vld [vmem:[%s455 + $0x418] sm:$0xff]
        %v690 = vld [vmem:[%s455 + $0x420] sm:$0xff]
        %v691 = vld [vmem:[%s455 + $0x428] sm:$0xff]
        %v692 = vld [vmem:[%s455 + $0x430] sm:$0xff]
        %v693 = vld [vmem:[%s455 + $0x438] sm:$0xff]
        %v694 = vld [vmem:[%s455 + $0x440] sm:$0xff]
        %v695 = vld [vmem:[%s455 + $0x448] sm:$0xff]
        %v696 = vld [vmem:[%s455 + $0x450] sm:$0xff]
        %v697 = vld [vmem:[%s455 + $0x458] sm:$0xff]
        %v698 = vld [vmem:[%s455 + $0x460] sm:$0xff]
        %v699 = vld [vmem:[%s455 + $0x468] sm:$0xff]
        %v700 = vld [vmem:[%s455 + $0x470] sm:$0xff]
        %v701 = vld [vmem:[%s455 + $0x478] sm:$0xff]
        %v706 = vunpack.c.l.b16 %v554
        %v707 = vunpack.c.h.b16 %v554
        %v708 = vunpack.c.l.b16 %v555
        %v709 = vunpack.c.l.b16 %v556
        %v710 = vunpack.c.h.b16 %v556
        %v711 = vunpack.c.l.b16 %v557
        %v712 = vpack.c.b16 %v709, %v706
        %v713 = vpack.c.b16 %v710, %v707
        %v714 = vpack.c.b16 %v711, %v708
        %v862 = vunpack.c.l.b16 %v558
        %v863 = vunpack.c.h.b16 %v558
        %v864 = vunpack.c.l.b16 %v559
        %v865 = vunpack.c.h.b16 %v559
        %v866 = vunpack.c.l.b16 %v560
        %v867 = vunpack.c.h.b16 %v560
        %v868 = vunpack.c.l.b16 %v561
        %v869 = vunpack.c.h.b16 %v561
        %v870 = vunpack.c.l.b16 %v562
        %v871 = vunpack.c.h.b16 %v562
        %v872 = vunpack.c.l.b16 %v563
        %v873 = vunpack.c.h.b16 %v563
        %v874 = vunpack.c.l.b16 %v564
        %v875 = vunpack.c.h.b16 %v564
        %v876 = vunpack.c.l.b16 %v565
        %v877 = vunpack.c.h.b16 %v565
        %v878 = vunpack.c.l.b16 %v566
        %v879 = vunpack.c.h.b16 %v566
        %v880 = vunpack.c.l.b16 %v567
        %v881 = vunpack.c.h.b16 %v567
        %v882 = vunpack.c.l.b16 %v568
        %v883 = vunpack.c.h.b16 %v568
        %v884 = vunpack.c.l.b16 %v569
        %v885 = vunpack.c.h.b16 %v569
        %v886 = vunpack.c.l.b16 %v570
        %v887 = vunpack.c.h.b16 %v570
        %v888 = vunpack.c.l.b16 %v571
        %v889 = vunpack.c.h.b16 %v571
        %v890 = vunpack.c.l.b16 %v572
        %v891 = vunpack.c.h.b16 %v572
        %v892 = vunpack.c.l.b16 %v573
        %v893 = vunpack.c.h.b16 %v573
        %v894 = vunpack.c.l.b16 %v574
        %v895 = vunpack.c.h.b16 %v574
        %v896 = vunpack.c.l.b16 %v575
        %v897 = vunpack.c.h.b16 %v575
        %v898 = vunpack.c.l.b16 %v576
        %v899 = vunpack.c.h.b16 %v576
        %v900 = vunpack.c.l.b16 %v577
        %v901 = vunpack.c.h.b16 %v577
        %v902 = vunpack.c.l.b16 %v578
        %v903 = vunpack.c.h.b16 %v578
        %v904 = vunpack.c.l.b16 %v579
        %v905 = vunpack.c.h.b16 %v579
        %v906 = vunpack.c.l.b16 %v580
        %v907 = vunpack.c.h.b16 %v580
        %v908 = vunpack.c.l.b16 %v581
        %v909 = vunpack.c.h.b16 %v581
        %v910 = vunpack.c.l.b16 %v582
        %v911 = vunpack.c.h.b16 %v582
        %v912 = vunpack.c.l.b16 %v583
        %v913 = vunpack.c.h.b16 %v583
        %v914 = vunpack.c.l.b16 %v584
        %v915 = vunpack.c.h.b16 %v584
        %v916 = vunpack.c.l.b16 %v585
        %v917 = vunpack.c.h.b16 %v585
        %v918 = vunpack.c.l.b16 %v586
        %v919 = vunpack.c.h.b16 %v586
        %v920 = vunpack.c.l.b16 %v587
        %v921 = vunpack.c.h.b16 %v587
        %v922 = vunpack.c.l.b16 %v588
        %v923 = vunpack.c.h.b16 %v588
        %v924 = vunpack.c.l.b16 %v589
        %v925 = vunpack.c.h.b16 %v589
        %v926 = vunpack.c.l.b16 %v590
        %v927 = vunpack.c.h.b16 %v590
        %v928 = vunpack.c.l.b16 %v591
        %v929 = vunpack.c.h.b16 %v591
        %v930 = vunpack.c.l.b16 %v592
        %v931 = vunpack.c.h.b16 %v592
        %v932 = vunpack.c.l.b16 %v593
        %v933 = vunpack.c.h.b16 %v593
        %v934 = vunpack.c.l.b16 %v594
        %v935 = vunpack.c.h.b16 %v594
        %v936 = vunpack.c.l.b16 %v595
        %v937 = vunpack.c.h.b16 %v595
        %v938 = vunpack.c.l.b16 %v596
        %v939 = vunpack.c.h.b16 %v596
        %v940 = vunpack.c.l.b16 %v597
        %v941 = vunpack.c.h.b16 %v597
        %v942 = vunpack.c.l.b16 %v598
        %v943 = vunpack.c.h.b16 %v598
        %v944 = vunpack.c.l.b16 %v599
        %v945 = vunpack.c.h.b16 %v599
        %v946 = vunpack.c.l.b16 %v600
        %v947 = vunpack.c.h.b16 %v600
        %v948 = vunpack.c.l.b16 %v601
        %v949 = vunpack.c.h.b16 %v601
        %v950 = vunpack.c.l.b16 %v602
        %v951 = vunpack.c.h.b16 %v602
        %v952 = vunpack.c.l.b16 %v603
        %v953 = vunpack.c.h.b16 %v603
        %v954 = vunpack.c.l.b16 %v604
        %v955 = vunpack.c.h.b16 %v604
        %v956 = vunpack.c.l.b16 %v605
        %v957 = vunpack.c.h.b16 %v605
        %v958 = vunpack.c.l.b16 %v606
        %v959 = vunpack.c.h.b16 %v606
        %v960 = vunpack.c.l.b16 %v607
        %v961 = vunpack.c.h.b16 %v607
        %v962 = vunpack.c.l.b16 %v608
        %v963 = vunpack.c.h.b16 %v608
        %v964 = vunpack.c.l.b16 %v609
        %v965 = vunpack.c.h.b16 %v609
        %v966 = vunpack.c.l.b16 %v610
        %v967 = vunpack.c.h.b16 %v610
        %v968 = vunpack.c.l.b16 %v611
        %v969 = vunpack.c.h.b16 %v611
        %v970 = vunpack.c.l.b16 %v612
        %v971 = vunpack.c.h.b16 %v612
        %v972 = vunpack.c.l.b16 %v613
        %v973 = vunpack.c.h.b16 %v613
        %v974 = vunpack.c.l.b16 %v614
        %v975 = vunpack.c.h.b16 %v614
        %v976 = vunpack.c.l.b16 %v615
        %v977 = vunpack.c.h.b16 %v615
        %v978 = vunpack.c.l.b16 %v616
        %v979 = vunpack.c.h.b16 %v616
        %v980 = vunpack.c.l.b16 %v617
        %v981 = vunpack.c.h.b16 %v617
        %v982 = vunpack.c.l.b16 %v618
        %v983 = vunpack.c.h.b16 %v618
        %v984 = vunpack.c.l.b16 %v619
        %v985 = vunpack.c.h.b16 %v619
        %v986 = vunpack.c.l.b16 %v620
        %v987 = vunpack.c.h.b16 %v620
        %v988 = vunpack.c.l.b16 %v621
        %v989 = vunpack.c.h.b16 %v621
        %v990 = vunpack.c.l.b16 %v622
        %v991 = vunpack.c.h.b16 %v622
        %v992 = vunpack.c.l.b16 %v623
        %v993 = vunpack.c.h.b16 %v623
        %v994 = vunpack.c.l.b16 %v624
        %v995 = vunpack.c.h.b16 %v624
        %v996 = vunpack.c.l.b16 %v625
        %v997 = vunpack.c.h.b16 %v625
        %v998 = vunpack.c.l.b16 %v626
        %v999 = vunpack.c.h.b16 %v626
        %v1000 = vunpack.c.l.b16 %v627
        %v1001 = vunpack.c.h.b16 %v627
        %v1002 = vunpack.c.l.b16 %v628
        %v1003 = vunpack.c.h.b16 %v628
        %v1004 = vunpack.c.l.b16 %v629
        %v1005 = vunpack.c.h.b16 %v629
        %v1006 = vunpack.c.l.b16 %v630
        %v1007 = vunpack.c.h.b16 %v630
        %v1008 = vunpack.c.l.b16 %v631
        %v1009 = vunpack.c.h.b16 %v631
        %v1010 = vunpack.c.l.b16 %v632
        %v1011 = vunpack.c.h.b16 %v632
        %v1012 = vunpack.c.l.b16 %v633
        %v1013 = vunpack.c.h.b16 %v633
        %v1014 = vunpack.c.l.b16 %v634
        %v1015 = vunpack.c.h.b16 %v634
        %v1016 = vunpack.c.l.b16 %v635
        %v1017 = vunpack.c.h.b16 %v635
        %v1018 = vunpack.c.l.b16 %v636
        %v1019 = vunpack.c.h.b16 %v636
        %v1020 = vunpack.c.l.b16 %v637
        %v1021 = vunpack.c.h.b16 %v637
        %v1022 = vunpack.c.l.b16 %v638
        %v1023 = vunpack.c.h.b16 %v638
        %v1024 = vunpack.c.l.b16 %v639
        %v1025 = vunpack.c.h.b16 %v639
        %v1026 = vunpack.c.l.b16 %v640
        %v1027 = vunpack.c.h.b16 %v640
        %v1028 = vunpack.c.l.b16 %v641
        %v1029 = vunpack.c.h.b16 %v641
        %v1030 = vunpack.c.l.b16 %v642
        %v1031 = vunpack.c.h.b16 %v642
        %v1032 = vunpack.c.l.b16 %v643
        %v1033 = vunpack.c.h.b16 %v643
        %v1034 = vunpack.c.l.b16 %v644
        %v1035 = vunpack.c.h.b16 %v644
        %v1036 = vunpack.c.l.b16 %v645
        %v1037 = vunpack.c.h.b16 %v645
        %v1038 = vunpack.c.l.b16 %v646
        %v1039 = vunpack.c.h.b16 %v646
        %v1040 = vunpack.c.l.b16 %v647
        %v1041 = vunpack.c.h.b16 %v647
        %v1042 = vunpack.c.l.b16 %v648
        %v1043 = vunpack.c.h.b16 %v648
        %v1044 = vunpack.c.l.b16 %v649
        %v1045 = vunpack.c.h.b16 %v649
        %v1046 = vunpack.c.l.b16 %v650
        %v1047 = vunpack.c.h.b16 %v650
        %v1048 = vunpack.c.l.b16 %v651
        %v1049 = vunpack.c.h.b16 %v651
        %v1050 = vunpack.c.l.b16 %v652
        %v1051 = vunpack.c.h.b16 %v652
        %v1052 = vunpack.c.l.b16 %v653
        %v1053 = vunpack.c.h.b16 %v653
        %v1054 = vunpack.c.l.b16 %v654
        %v1055 = vunpack.c.h.b16 %v654
        %v1056 = vunpack.c.l.b16 %v655
        %v1057 = vunpack.c.h.b16 %v655
        %v1058 = vunpack.c.l.b16 %v656
        %v1059 = vunpack.c.h.b16 %v656
        %v1060 = vunpack.c.l.b16 %v657
        %v1061 = vunpack.c.h.b16 %v657
        %v1062 = vunpack.c.l.b16 %v658
        %v1063 = vunpack.c.h.b16 %v658
        %v1064 = vunpack.c.l.b16 %v659
        %v1065 = vunpack.c.h.b16 %v659
        %v1066 = vunpack.c.l.b16 %v660
        %v1067 = vunpack.c.h.b16 %v660
        %v1068 = vunpack.c.l.b16 %v661
        %v1069 = vunpack.c.h.b16 %v661
        %v1070 = vunpack.c.l.b16 %v662
        %v1071 = vunpack.c.h.b16 %v662
        %v1072 = vunpack.c.l.b16 %v663
        %v1073 = vunpack.c.h.b16 %v663
        %v1074 = vunpack.c.l.b16 %v664
        %v1075 = vunpack.c.h.b16 %v664
        %v1076 = vunpack.c.l.b16 %v665
        %v1077 = vunpack.c.h.b16 %v665
        %v1078 = vunpack.c.l.b16 %v666
        %v1079 = vunpack.c.h.b16 %v666
        %v1080 = vunpack.c.l.b16 %v667
        %v1081 = vunpack.c.h.b16 %v667
        %v1082 = vunpack.c.l.b16 %v668
        %v1083 = vunpack.c.h.b16 %v668
        %v1084 = vunpack.c.l.b16 %v669
        %v1085 = vunpack.c.h.b16 %v669
        %v1086 = vunpack.c.l.b16 %v670
        %v1087 = vunpack.c.h.b16 %v670
        %v1088 = vunpack.c.l.b16 %v671
        %v1089 = vunpack.c.h.b16 %v671
        %v1090 = vunpack.c.l.b16 %v672
        %v1091 = vunpack.c.h.b16 %v672
        %v1092 = vunpack.c.l.b16 %v673
        %v1093 = vunpack.c.h.b16 %v673
        %v1094 = vunpack.c.l.b16 %v674
        %v1095 = vunpack.c.h.b16 %v674
        %v1096 = vunpack.c.l.b16 %v675
        %v1097 = vunpack.c.h.b16 %v675
        %v1098 = vunpack.c.l.b16 %v676
        %v1099 = vunpack.c.h.b16 %v676
        %v1100 = vunpack.c.l.b16 %v677
        %v1101 = vunpack.c.h.b16 %v677
        %v1102 = vunpack.c.l.b16 %v678
        %v1103 = vunpack.c.h.b16 %v678
        %v1104 = vunpack.c.l.b16 %v679
        %v1105 = vunpack.c.h.b16 %v679
        %v1106 = vunpack.c.l.b16 %v680
        %v1107 = vunpack.c.h.b16 %v680
        %v1108 = vunpack.c.l.b16 %v681
        %v1109 = vunpack.c.h.b16 %v681
        %v1110 = vunpack.c.l.b16 %v682
        %v1111 = vunpack.c.h.b16 %v682
        %v1112 = vunpack.c.l.b16 %v683
        %v1113 = vunpack.c.h.b16 %v683
        %v1114 = vunpack.c.l.b16 %v684
        %v1115 = vunpack.c.h.b16 %v684
        %v1116 = vunpack.c.l.b16 %v685
        %v1117 = vunpack.c.h.b16 %v685
        %v1118 = vunpack.c.l.b16 %v686
        %v1119 = vunpack.c.h.b16 %v686
        %v1120 = vunpack.c.l.b16 %v687
        %v1121 = vunpack.c.h.b16 %v687
        %v1122 = vunpack.c.l.b16 %v688
        %v1123 = vunpack.c.h.b16 %v688
        %v1124 = vunpack.c.l.b16 %v689
        %v1125 = vunpack.c.h.b16 %v689
        %v1126 = vunpack.c.l.b16 %v690
        %v1127 = vunpack.c.h.b16 %v690
        %v1128 = vunpack.c.l.b16 %v691
        %v1129 = vunpack.c.h.b16 %v691
        %v1130 = vunpack.c.l.b16 %v692
        %v1131 = vunpack.c.h.b16 %v692
        %v1132 = vunpack.c.l.b16 %v693
        %v1133 = vunpack.c.h.b16 %v693
        %v1134 = vunpack.c.l.b16 %v694
        %v1135 = vunpack.c.h.b16 %v694
        %v1136 = vunpack.c.l.b16 %v695
        %v1137 = vunpack.c.h.b16 %v695
        %v1138 = vunpack.c.l.b16 %v696
        %v1139 = vunpack.c.h.b16 %v696
        %v1140 = vunpack.c.l.b16 %v697
        %v1141 = vunpack.c.h.b16 %v697
        %v1142 = vunpack.c.l.b16 %v698
        %v1143 = vunpack.c.h.b16 %v698
        %v1144 = vunpack.c.l.b16 %v699
        %v1145 = vunpack.c.h.b16 %v699
        %v1146 = vunpack.c.l.b16 %v700
        %v1147 = vunpack.c.h.b16 %v700
        %v1148 = vunpack.c.l.b16 %v701
        %v1149 = vunpack.c.h.b16 %v701
        %v1150 = vpack.c.b16 %v868, %v862
        %v1151 = vpack.c.b16 %v869, %v863
        %v1152 = vpack.c.b16 %v870, %v864
        %v1153 = vpack.c.b16 %v871, %v865
        %v1154 = vpack.c.b16 %v872, %v866
        %v1155 = vpack.c.b16 %v873, %v867
        %v1156 = vpack.c.b16 %v880, %v874
        %v1157 = vpack.c.b16 %v881, %v875
        %v1158 = vpack.c.b16 %v882, %v876
        %v1159 = vpack.c.b16 %v883, %v877
        %v1160 = vpack.c.b16 %v884, %v878
        %v1161 = vpack.c.b16 %v885, %v879
        %v1162 = vpack.c.b16 %v892, %v886
        %v1163 = vpack.c.b16 %v893, %v887
        %v1164 = vpack.c.b16 %v894, %v888
        %v1165 = vpack.c.b16 %v895, %v889
        %v1166 = vpack.c.b16 %v896, %v890
        %v1167 = vpack.c.b16 %v897, %v891
        %v1168 = vpack.c.b16 %v904, %v898
        %v1169 = vpack.c.b16 %v905, %v899
        %v1170 = vpack.c.b16 %v906, %v900
        %v1171 = vpack.c.b16 %v907, %v901
        %v1172 = vpack.c.b16 %v908, %v902
        %v1173 = vpack.c.b16 %v909, %v903
        %v1174 = vpack.c.b16 %v916, %v910
        %v1175 = vpack.c.b16 %v917, %v911
        %v1176 = vpack.c.b16 %v918, %v912
        %v1177 = vpack.c.b16 %v919, %v913
        %v1178 = vpack.c.b16 %v920, %v914
        %v1179 = vpack.c.b16 %v921, %v915
        %v1180 = vpack.c.b16 %v928, %v922
        %v1181 = vpack.c.b16 %v929, %v923
        %v1182 = vpack.c.b16 %v930, %v924
        %v1183 = vpack.c.b16 %v931, %v925
        %v1184 = vpack.c.b16 %v932, %v926
        %v1185 = vpack.c.b16 %v933, %v927
        %v1186 = vpack.c.b16 %v940, %v934
        %v1187 = vpack.c.b16 %v941, %v935
        %v1188 = vpack.c.b16 %v942, %v936
        %v1189 = vpack.c.b16 %v943, %v937
        %v1190 = vpack.c.b16 %v944, %v938
        %v1191 = vpack.c.b16 %v945, %v939
        %v1192 = vpack.c.b16 %v952, %v946
        %v1193 = vpack.c.b16 %v953, %v947
        %v1194 = vpack.c.b16 %v954, %v948
        %v1195 = vpack.c.b16 %v955, %v949
        %v1196 = vpack.c.b16 %v956, %v950
        %v1197 = vpack.c.b16 %v957, %v951
        %v1198 = vpack.c.b16 %v964, %v958
        %v1199 = vpack.c.b16 %v965, %v959
        %v1200 = vpack.c.b16 %v966, %v960
        %v1201 = vpack.c.b16 %v967, %v961
        %v1202 = vpack.c.b16 %v968, %v962
        %v1203 = vpack.c.b16 %v969, %v963
        %v1204 = vpack.c.b16 %v976, %v970
        %v1205 = vpack.c.b16 %v977, %v971
        %v1206 = vpack.c.b16 %v978, %v972
        %v1207 = vpack.c.b16 %v979, %v973
        %v1208 = vpack.c.b16 %v980, %v974
        %v1209 = vpack.c.b16 %v981, %v975
        %v1210 = vpack.c.b16 %v988, %v982
        %v1211 = vpack.c.b16 %v989, %v983
        %v1212 = vpack.c.b16 %v990, %v984
        %v1213 = vpack.c.b16 %v991, %v985
        %v1214 = vpack.c.b16 %v992, %v986
        %v1215 = vpack.c.b16 %v993, %v987
        %v1216 = vpack.c.b16 %v1000, %v994
        %v1217 = vpack.c.b16 %v1001, %v995
        %v1218 = vpack.c.b16 %v1002, %v996
        %v1219 = vpack.c.b16 %v1003, %v997
        %v1220 = vpack.c.b16 %v1004, %v998
        %v1221 = vpack.c.b16 %v1005, %v999
        %v1222 = vpack.c.b16 %v1012, %v1006
        %v1223 = vpack.c.b16 %v1013, %v1007
        %v1224 = vpack.c.b16 %v1014, %v1008
        %v1225 = vpack.c.b16 %v1015, %v1009
        %v1226 = vpack.c.b16 %v1016, %v1010
        %v1227 = vpack.c.b16 %v1017, %v1011
        %v1228 = vpack.c.b16 %v1024, %v1018
        %v1229 = vpack.c.b16 %v1025, %v1019
        %v1230 = vpack.c.b16 %v1026, %v1020
        %v1231 = vpack.c.b16 %v1027, %v1021
        %v1232 = vpack.c.b16 %v1028, %v1022
        %v1233 = vpack.c.b16 %v1029, %v1023
        %v1234 = vpack.c.b16 %v1036, %v1030
        %v1235 = vpack.c.b16 %v1037, %v1031
        %v1236 = vpack.c.b16 %v1038, %v1032
        %v1237 = vpack.c.b16 %v1039, %v1033
        %v1238 = vpack.c.b16 %v1040, %v1034
        %v1239 = vpack.c.b16 %v1041, %v1035
        %v1240 = vpack.c.b16 %v1048, %v1042
        %v1241 = vpack.c.b16 %v1049, %v1043
        %v1242 = vpack.c.b16 %v1050, %v1044
        %v1243 = vpack.c.b16 %v1051, %v1045
        %v1244 = vpack.c.b16 %v1052, %v1046
        %v1245 = vpack.c.b16 %v1053, %v1047
        %v1246 = vpack.c.b16 %v1060, %v1054
        %v1247 = vpack.c.b16 %v1061, %v1055
        %v1248 = vpack.c.b16 %v1062, %v1056
        %v1249 = vpack.c.b16 %v1063, %v1057
        %v1250 = vpack.c.b16 %v1064, %v1058
        %v1251 = vpack.c.b16 %v1065, %v1059
        %v1252 = vpack.c.b16 %v1072, %v1066
        %v1253 = vpack.c.b16 %v1073, %v1067
        %v1254 = vpack.c.b16 %v1074, %v1068
        %v1255 = vpack.c.b16 %v1075, %v1069
        %v1256 = vpack.c.b16 %v1076, %v1070
        %v1257 = vpack.c.b16 %v1077, %v1071
        %v1258 = vpack.c.b16 %v1084, %v1078
        %v1259 = vpack.c.b16 %v1085, %v1079
        %v1260 = vpack.c.b16 %v1086, %v1080
        %v1261 = vpack.c.b16 %v1087, %v1081
        %v1262 = vpack.c.b16 %v1088, %v1082
        %v1263 = vpack.c.b16 %v1089, %v1083
        %v1264 = vpack.c.b16 %v1096, %v1090
        %v1265 = vpack.c.b16 %v1097, %v1091
        %v1266 = vpack.c.b16 %v1098, %v1092
        %v1267 = vpack.c.b16 %v1099, %v1093
        %v1268 = vpack.c.b16 %v1100, %v1094
        %v1269 = vpack.c.b16 %v1101, %v1095
        %v1270 = vpack.c.b16 %v1108, %v1102
        %v1271 = vpack.c.b16 %v1109, %v1103
        %v1272 = vpack.c.b16 %v1110, %v1104
        %v1273 = vpack.c.b16 %v1111, %v1105
        %v1274 = vpack.c.b16 %v1112, %v1106
        %v1275 = vpack.c.b16 %v1113, %v1107
        %v1276 = vpack.c.b16 %v1120, %v1114
        %v1277 = vpack.c.b16 %v1121, %v1115
        %v1278 = vpack.c.b16 %v1122, %v1116
        %v1279 = vpack.c.b16 %v1123, %v1117
        %v1280 = vpack.c.b16 %v1124, %v1118
        %v1281 = vpack.c.b16 %v1125, %v1119
        %v1282 = vpack.c.b16 %v1132, %v1126
        %v1283 = vpack.c.b16 %v1133, %v1127
        %v1284 = vpack.c.b16 %v1134, %v1128
        %v1285 = vpack.c.b16 %v1135, %v1129
        %v1286 = vpack.c.b16 %v1136, %v1130
        %v1287 = vpack.c.b16 %v1137, %v1131
        %v1288 = vpack.c.b16 %v1144, %v1138
        %v1289 = vpack.c.b16 %v1145, %v1139
        %v1290 = vpack.c.b16 %v1146, %v1140
        %v1291 = vpack.c.b16 %v1147, %v1141
        %v1292 = vpack.c.b16 %v1148, %v1142
        %v1293 = vpack.c.b16 %v1149, %v1143
        %1438 = vmatpush.bf16.msra.mxu0 %v1192
        %1439 = vmatpush.bf16.msra.mxu0 %v1186
        %1440 = vmatpush.bf16.msra.mxu0 %v1180
        %1441 = vmatpush.bf16.msra.mxu0 %v1174
        %1442 = vmatpush.bf16.msra.mxu0 %v1168
        %1443 = vmatpush.bf16.msra.mxu0 %v1162
        %1444 = vmatpush.bf16.msra.mxu0 %v1156
        %1445 = vmatpush.bf16.msra.mxu0 %v1150
        %1446 = vmatmul.bf16.gmra.mxu0 %v712
        %v1447 = vpop.f32.mrf.mxu0
        %v1448 = vadd.f32 0.0, %v1447
        %v1449 = vpop.f32.mrf.mxu0
        %v1450 = vadd.f32 0.0, %v1449
        %1451 = vdwg.mxu0
        %1452 = vmatpush.bf16.msra.mxu0 %v1240
        %1453 = vmatpush.bf16.msra.mxu0 %v1234
        %1454 = vmatpush.bf16.msra.mxu0 %v1228
        %1455 = vmatpush.bf16.msra.mxu0 %v1222
        %1456 = vmatpush.bf16.msra.mxu0 %v1216
        %1457 = vmatpush.bf16.msra.mxu0 %v1210
        %1458 = vmatpush.bf16.msra.mxu0 %v1204
        %1459 = vmatpush.bf16.msra.mxu0 %v1198
        %1460 = vmatmul.bf16.gmra.mxu0 %v713
        %v1461 = vpop.f32.mrf.mxu0
        %v1462 = vadd.f32 %v1448, %v1461
        %v1463 = vpop.f32.mrf.mxu0
        %v1464 = vadd.f32 %v1450, %v1463
        %1465 = vdwg.mxu0
        %1466 = vmatpush.bf16.msra.mxu0 %v1288
        %1467 = vmatpush.bf16.msra.mxu0 %v1282
        %1468 = vmatpush.bf16.msra.mxu0 %v1276
        %1469 = vmatpush.bf16.msra.mxu0 %v1270
        %1470 = vmatpush.bf16.msra.mxu0 %v1264
        %1471 = vmatpush.bf16.msra.mxu0 %v1258
        %1472 = vmatpush.bf16.msra.mxu0 %v1252
        %1473 = vmatpush.bf16.msra.mxu0 %v1246
        %1474 = vmatmul.bf16.gmra.mxu0 %v714
        %v1475 = vpop.f32.mrf.mxu0
        %v1476 = vadd.f32 %v1462, %v1475
        %v1477 = vpop.f32.mrf.mxu0
        %v1478 = vadd.f32 %v1464, %v1477
        %1479 = vdwg.mxu0
        %1480 = vmatpush.bf16.msra.mxu0 %v1193
        %1481 = vmatpush.bf16.msra.mxu0 %v1187
        %1482 = vmatpush.bf16.msra.mxu0 %v1181
        %1483 = vmatpush.bf16.msra.mxu0 %v1175
        %1484 = vmatpush.bf16.msra.mxu0 %v1169
        %1485 = vmatpush.bf16.msra.mxu0 %v1163
        %1486 = vmatpush.bf16.msra.mxu0 %v1157
        %1487 = vmatpush.bf16.msra.mxu0 %v1151
        %1488 = vmatmul.bf16.gmra.mxu0 %v712
        %v1489 = vpop.f32.mrf.mxu0
        %v1490 = vadd.f32 0.0, %v1489
        %v1491 = vpop.f32.mrf.mxu0
        %v1492 = vadd.f32 0.0, %v1491
        %1493 = vdwg.mxu0
        %1494 = vmatpush.bf16.msra.mxu0 %v1241
        %1495 = vmatpush.bf16.msra.mxu0 %v1235
        %1496 = vmatpush.bf16.msra.mxu0 %v1229
        %1497 = vmatpush.bf16.msra.mxu0 %v1223
        %1498 = vmatpush.bf16.msra.mxu0 %v1217
        %1499 = vmatpush.bf16.msra.mxu0 %v1211
        %1500 = vmatpush.bf16.msra.mxu0 %v1205
        %1501 = vmatpush.bf16.msra.mxu0 %v1199
        %1502 = vmatmul.bf16.gmra.mxu0 %v713
        %v1503 = vpop.f32.mrf.mxu0
        %v1504 = vadd.f32 %v1490, %v1503
        %v1505 = vpop.f32.mrf.mxu0
        %v1506 = vadd.f32 %v1492, %v1505
        %1507 = vdwg.mxu0
        %1508 = vmatpush.bf16.msra.mxu0 %v1289
        %1509 = vmatpush.bf16.msra.mxu0 %v1283
        %1510 = vmatpush.bf16.msra.mxu0 %v1277
        %1511 = vmatpush.bf16.msra.mxu0 %v1271
        %1512 = vmatpush.bf16.msra.mxu0 %v1265
        %1513 = vmatpush.bf16.msra.mxu0 %v1259
        %1514 = vmatpush.bf16.msra.mxu0 %v1253
        %1515 = vmatpush.bf16.msra.mxu0 %v1247
        %1516 = vmatmul.bf16.gmra.mxu0 %v714
        %v1517 = vpop.f32.mrf.mxu0
        %v1518 = vadd.f32 %v1504, %v1517
        %v1519 = vpop.f32.mrf.mxu0
        %v1520 = vadd.f32 %v1506, %v1519
        %1521 = vdwg.mxu0
        %1522 = vmatpush.bf16.msra.mxu0 %v1194
        %1523 = vmatpush.bf16.msra.mxu0 %v1188
        %1524 = vmatpush.bf16.msra.mxu0 %v1182
        %1525 = vmatpush.bf16.msra.mxu0 %v1176
        %1526 = vmatpush.bf16.msra.mxu0 %v1170
        %1527 = vmatpush.bf16.msra.mxu0 %v1164
        %1528 = vmatpush.bf16.msra.mxu0 %v1158
        %1529 = vmatpush.bf16.msra.mxu0 %v1152
        %1530 = vmatmul.bf16.gmra.mxu0 %v712
        %v1531 = vpop.f32.mrf.mxu0
        %v1532 = vadd.f32 0.0, %v1531
        %v1533 = vpop.f32.mrf.mxu0
        %v1534 = vadd.f32 0.0, %v1533
        %1535 = vdwg.mxu0
        %1536 = vmatpush.bf16.msra.mxu0 %v1242
        %1537 = vmatpush.bf16.msra.mxu0 %v1236
        %1538 = vmatpush.bf16.msra.mxu0 %v1230
        %1539 = vmatpush.bf16.msra.mxu0 %v1224
        %1540 = vmatpush.bf16.msra.mxu0 %v1218
        %1541 = vmatpush.bf16.msra.mxu0 %v1212
        %1542 = vmatpush.bf16.msra.mxu0 %v1206
        %1543 = vmatpush.bf16.msra.mxu0 %v1200
        %1544 = vmatmul.bf16.gmra.mxu0 %v713
        %v1545 = vpop.f32.mrf.mxu0
        %v1546 = vadd.f32 %v1532, %v1545
        %v1547 = vpop.f32.mrf.mxu0
        %v1548 = vadd.f32 %v1534, %v1547
        %1549 = vdwg.mxu0
        %1550 = vmatpush.bf16.msra.mxu0 %v1290
        %1551 = vmatpush.bf16.msra.mxu0 %v1284
        %1552 = vmatpush.bf16.msra.mxu0 %v1278
        %1553 = vmatpush.bf16.msra.mxu0 %v1272
        %1554 = vmatpush.bf16.msra.mxu0 %v1266
        %1555 = vmatpush.bf16.msra.mxu0 %v1260
        %1556 = vmatpush.bf16.msra.mxu0 %v1254
        %1557 = vmatpush.bf16.msra.mxu0 %v1248
        %1558 = vmatmul.bf16.gmra.mxu0 %v714
        %v1559 = vpop.f32.mrf.mxu0
        %v1560 = vadd.f32 %v1546, %v1559
        %v1561 = vpop.f32.mrf.mxu0
        %v1562 = vadd.f32 %v1548, %v1561
        %1563 = vdwg.mxu0
        %1564 = vmatpush.bf16.msra.mxu0 %v1195
        %1565 = vmatpush.bf16.msra.mxu0 %v1189
        %1566 = vmatpush.bf16.msra.mxu0 %v1183
        %1567 = vmatpush.bf16.msra.mxu0 %v1177
        %1568 = vmatpush.bf16.msra.mxu0 %v1171
        %1569 = vmatpush.bf16.msra.mxu0 %v1165
        %1570 = vmatpush.bf16.msra.mxu0 %v1159
        %1571 = vmatpush.bf16.msra.mxu0 %v1153
        %1572 = vmatmul.bf16.gmra.mxu0 %v712
        %v1573 = vpop.f32.mrf.mxu0
        %v1574 = vadd.f32 0.0, %v1573
        %v1575 = vpop.f32.mrf.mxu0
        %v1576 = vadd.f32 0.0, %v1575
        %1577 = vdwg.mxu0
        %1578 = vmatpush.bf16.msra.mxu0 %v1243
        %1579 = vmatpush.bf16.msra.mxu0 %v1237
        %1580 = vmatpush.bf16.msra.mxu0 %v1231
        %1581 = vmatpush.bf16.msra.mxu0 %v1225
        %1582 = vmatpush.bf16.msra.mxu0 %v1219
        %1583 = vmatpush.bf16.msra.mxu0 %v1213
        %1584 = vmatpush.bf16.msra.mxu0 %v1207
        %1585 = vmatpush.bf16.msra.mxu0 %v1201
        %1586 = vmatmul.bf16.gmra.mxu0 %v713
        %v1587 = vpop.f32.mrf.mxu0
        %v1588 = vadd.f32 %v1574, %v1587
        %v1589 = vpop.f32.mrf.mxu0
        %v1590 = vadd.f32 %v1576, %v1589
        %1591 = vdwg.mxu0
        %1592 = vmatpush.bf16.msra.mxu0 %v1291
        %1593 = vmatpush.bf16.msra.mxu0 %v1285
        %1594 = vmatpush.bf16.msra.mxu0 %v1279
        %1595 = vmatpush.bf16.msra.mxu0 %v1273
        %1596 = vmatpush.bf16.msra.mxu0 %v1267
        %1597 = vmatpush.bf16.msra.mxu0 %v1261
        %1598 = vmatpush.bf16.msra.mxu0 %v1255
        %1599 = vmatpush.bf16.msra.mxu0 %v1249
        %1600 = vmatmul.bf16.gmra.mxu0 %v714
        %v1601 = vpop.f32.mrf.mxu0
        %v1602 = vadd.f32 %v1588, %v1601
        %v1603 = vpop.f32.mrf.mxu0
        %v1604 = vadd.f32 %v1590, %v1603
        %1605 = vdwg.mxu0
        %1606 = vmatpush.bf16.msra.mxu0 %v1196
        %1607 = vmatpush.bf16.msra.mxu0 %v1190
        %1608 = vmatpush.bf16.msra.mxu0 %v1184
        %1609 = vmatpush.bf16.msra.mxu0 %v1178
        %1610 = vmatpush.bf16.msra.mxu0 %v1172
        %1611 = vmatpush.bf16.msra.mxu0 %v1166
        %1612 = vmatpush.bf16.msra.mxu0 %v1160
        %1613 = vmatpush.bf16.msra.mxu0 %v1154
        %1614 = vmatmul.bf16.gmra.mxu0 %v712
        %v1615 = vpop.f32.mrf.mxu0
        %v1616 = vadd.f32 0.0, %v1615
        %v1617 = vpop.f32.mrf.mxu0
        %v1618 = vadd.f32 0.0, %v1617
        %1619 = vdwg.mxu0
        %1620 = vmatpush.bf16.msra.mxu0 %v1244
        %1621 = vmatpush.bf16.msra.mxu0 %v1238
        %1622 = vmatpush.bf16.msra.mxu0 %v1232
        %1623 = vmatpush.bf16.msra.mxu0 %v1226
        %1624 = vmatpush.bf16.msra.mxu0 %v1220
        %1625 = vmatpush.bf16.msra.mxu0 %v1214
        %1626 = vmatpush.bf16.msra.mxu0 %v1208
        %1627 = vmatpush.bf16.msra.mxu0 %v1202
        %1628 = vmatmul.bf16.gmra.mxu0 %v713
        %v1629 = vpop.f32.mrf.mxu0
        %v1630 = vadd.f32 %v1616, %v1629
        %v1631 = vpop.f32.mrf.mxu0
        %v1632 = vadd.f32 %v1618, %v1631
        %1633 = vdwg.mxu0
        %1634 = vmatpush.bf16.msra.mxu0 %v1292
        %1635 = vmatpush.bf16.msra.mxu0 %v1286
        %1636 = vmatpush.bf16.msra.mxu0 %v1280
        %1637 = vmatpush.bf16.msra.mxu0 %v1274
        %1638 = vmatpush.bf16.msra.mxu0 %v1268
        %1639 = vmatpush.bf16.msra.mxu0 %v1262
        %1640 = vmatpush.bf16.msra.mxu0 %v1256
        %1641 = vmatpush.bf16.msra.mxu0 %v1250
        %1642 = vmatmul.bf16.gmra.mxu0 %v714
        %v1643 = vpop.f32.mrf.mxu0
        %v1644 = vadd.f32 %v1630, %v1643
        %v1645 = vpop.f32.mrf.mxu0
        %v1646 = vadd.f32 %v1632, %v1645
        %1647 = vdwg.mxu0
        %1648 = vmatpush.bf16.msra.mxu0 %v1197
        %1649 = vmatpush.bf16.msra.mxu0 %v1191
        %1650 = vmatpush.bf16.msra.mxu0 %v1185
        %1651 = vmatpush.bf16.msra.mxu0 %v1179
        %1652 = vmatpush.bf16.msra.mxu0 %v1173
        %1653 = vmatpush.bf16.msra.mxu0 %v1167
        %1654 = vmatpush.bf16.msra.mxu0 %v1161
        %1655 = vmatpush.bf16.msra.mxu0 %v1155
        %1656 = vmatmul.bf16.gmra.mxu0 %v712
        %v1657 = vpop.f32.mrf.mxu0
        %v1658 = vadd.f32 0.0, %v1657
        %v1659 = vpop.f32.mrf.mxu0
        %v1660 = vadd.f32 0.0, %v1659
        %1661 = vdwg.mxu0
        %1662 = vmatpush.bf16.msra.mxu0 %v1245
        %1663 = vmatpush.bf16.msra.mxu0 %v1239
        %1664 = vmatpush.bf16.msra.mxu0 %v1233
        %1665 = vmatpush.bf16.msra.mxu0 %v1227
        %1666 = vmatpush.bf16.msra.mxu0 %v1221
        %1667 = vmatpush.bf16.msra.mxu0 %v1215
        %1668 = vmatpush.bf16.msra.mxu0 %v1209
        %1669 = vmatpush.bf16.msra.mxu0 %v1203
        %1670 = vmatmul.bf16.gmra.mxu0 %v713
        %v1671 = vpop.f32.mrf.mxu0
        %v1672 = vadd.f32 %v1658, %v1671
        %v1673 = vpop.f32.mrf.mxu0
        %v1674 = vadd.f32 %v1660, %v1673
        %1675 = vdwg.mxu0
        %1676 = vmatpush.bf16.msra.mxu0 %v1293
        %1677 = vmatpush.bf16.msra.mxu0 %v1287
        %1678 = vmatpush.bf16.msra.mxu0 %v1281
        %1679 = vmatpush.bf16.msra.mxu0 %v1275
        %1680 = vmatpush.bf16.msra.mxu0 %v1269
        %1681 = vmatpush.bf16.msra.mxu0 %v1263
        %1682 = vmatpush.bf16.msra.mxu0 %v1257
        %1683 = vmatpush.bf16.msra.mxu0 %v1251
        %1684 = vmatmul.bf16.gmra.mxu0 %v714
        %v1685 = vpop.f32.mrf.mxu0
        %v1686 = vadd.f32 %v1672, %v1685
        %v1687 = vpop.f32.mrf.mxu0
        %v1688 = vadd.f32 %v1674, %v1687
        %1689 = vdwg.mxu0
        %v1690 = vadd.f32 %v542, %v1476
        %v1691 = vadd.f32 %v543, %v1518
        %v1692 = vadd.f32 %v544, %v1560
        %v1693 = vadd.f32 %v545, %v1602
        %v1694 = vadd.f32 %v546, %v1644
        %v1695 = vadd.f32 %v547, %v1686
        %v1696 = vadd.f32 %v548, %v1478
        %v1697 = vadd.f32 %v549, %v1520
        %v1698 = vadd.f32 %v550, %v1562
        %v1699 = vadd.f32 %v551, %v1604
        %v1700 = vadd.f32 %v552, %v1646
        %v1701 = vadd.f32 %v553, %v1688
        %1702 = vst [vmem:[#allocation2] sm:$0xff] %v1690
        %1703 = vst [vmem:[#allocation2 + $0x8] sm:$0xff] %v1691
        %1704 = vst [vmem:[#allocation2 + $0x10] sm:$0xff] %v1692
        %1705 = vst [vmem:[#allocation2 + $0x18] sm:$0xff] %v1693
        %1706 = vst [vmem:[#allocation2 + $0x20] sm:$0xff] %v1694
        %1707 = vst [vmem:[#allocation2 + $0x28] sm:$0xff] %v1695
        %1708 = vst [vmem:[#allocation2 + $0x30] sm:$0xff] %v1696
        %1709 = vst [vmem:[#allocation2 + $0x38] sm:$0xff] %v1697
        %1710 = vst [vmem:[#allocation2 + $0x40] sm:$0xff] %v1698
        %1711 = vst [vmem:[#allocation2 + $0x48] sm:$0xff] %v1699
        %1712 = vst [vmem:[#allocation2 + $0x50] sm:$0xff] %v1700
        %1713 = vst [vmem:[#allocation2 + $0x58] sm:$0xff] %v1701
        %p1714 = scmp.eq.s32.totalorder %s33, 1
        // Predicated region
        $region97: #{tpu_custom_call.1} parent=55 // pred_check
          %p1715 = pneg %p1714
        $region98: #{tpu_custom_call.1} parent=55 // pred_check_branch
          %1717 = sbr.rel (%p1715) target = $region100
        $region99: #{tpu_custom_call.1} parent=55 // pred_region
          %v1718 = vld [vmem:[#allocation2] sm:$0xff]
          %v1719 = vld [vmem:[#allocation2 + $0x8] sm:$0xff]
          %v1720 = vld [vmem:[#allocation2 + $0x10] sm:$0xff]
          %v1721 = vld [vmem:[#allocation2 + $0x18] sm:$0xff]
          %v1722 = vld [vmem:[#allocation2 + $0x20] sm:$0xff]
          %v1723 = vld [vmem:[#allocation2 + $0x28] sm:$0xff]
          %v1724 = vld [vmem:[#allocation2 + $0x30] sm:$0xff]
          %v1725 = vld [vmem:[#allocation2 + $0x38] sm:$0xff]
          %v1726 = vld [vmem:[#allocation2 + $0x40] sm:$0xff]
          %v1727 = vld [vmem:[#allocation2 + $0x48] sm:$0xff]
          %v1728 = vld [vmem:[#allocation2 + $0x50] sm:$0xff]
          %v1729 = vld [vmem:[#allocation2 + $0x58] sm:$0xff]
          %v1730 = vld [vmem:[#allocation9] sm:$0x3f]
          %v1732 = vperm.slane %v1730, 0
          %v1733 = vperm.slane %v1730, 1
          %v1734 = vperm.slane %v1730, 2
          %v1735 = vperm.slane %v1730, 3
          %v1736 = vperm.slane %v1730, 4
          %v1737 = vperm.slane %v1730, 5
          %v1744 = vadd.f32 %v1718, %v1732
          %v1745 = vadd.f32 %v1719, %v1733
          %v1746 = vadd.f32 %v1720, %v1734
          %v1747 = vadd.f32 %v1721, %v1735
          %v1748 = vadd.f32 %v1722, %v1736
          %v1749 = vadd.f32 %v1723, %v1737
          %v1750 = vadd.f32 %v1724, %v1732
          %v1751 = vadd.f32 %v1725, %v1733
          %v1752 = vadd.f32 %v1726, %v1734
          %v1753 = vadd.f32 %v1727, %v1735
          %v1754 = vadd.f32 %v1728, %v1736
          %v1755 = vadd.f32 %v1729, %v1737
          %v1756 = vld [vmem:[#allocation6] sm:$0xff]
          %v1757 = vld [vmem:[#allocation6 + $0x8] sm:$0xff]
          %v1758 = vld [vmem:[#allocation10] sm:$0xff]
          %v1759 = vld [vmem:[#allocation10 + $0x8] sm:$0xff]
          %v1760 = vld [vmem:[#allocation10 + $0x10] sm:$0xff]
          %v1761 = vld [vmem:[#allocation10 + $0x18] sm:$0xff]
          %v1762 = vld [vmem:[#allocation10 + $0x20] sm:$0xff]
          %v1763 = vld [vmem:[#allocation10 + $0x28] sm:$0xff]
          %v1764 = vld [vmem:[#allocation10 + $0x30] sm:$0xff]
          %v1765 = vld [vmem:[#allocation10 + $0x38] sm:$0xff]
          %v1766 = vld [vmem:[#allocation10 + $0x40] sm:$0xff]
          %v1767 = vld [vmem:[#allocation10 + $0x48] sm:$0xff]
          %v1768 = vld [vmem:[#allocation10 + $0x50] sm:$0xff]
          %v1769 = vld [vmem:[#allocation10 + $0x58] sm:$0xff]
          %v1770 = vld [vmem:[#allocation10 + $0x60] sm:$0xff]
          %v1771 = vld [vmem:[#allocation10 + $0x68] sm:$0xff]
          %v1772 = vld [vmem:[#allocation10 + $0x70] sm:$0xff]
          %v1773 = vld [vmem:[#allocation10 + $0x78] sm:$0xff]
          %v1774 = vld [vmem:[#allocation10 + $0x80] sm:$0xff]
          %v1775 = vld [vmem:[#allocation10 + $0x88] sm:$0xff]
          %v1776 = vld [vmem:[#allocation10 + $0x90] sm:$0xff]
          %v1777 = vld [vmem:[#allocation10 + $0x98] sm:$0xff]
          %v1778 = vld [vmem:[#allocation10 + $0xa0] sm:$0xff]
          %v1779 = vld [vmem:[#allocation10 + $0xa8] sm:$0xff]
          %v1780 = vld [vmem:[#allocation10 + $0xb0] sm:$0xff]
          %v1781 = vld [vmem:[#allocation10 + $0xb8] sm:$0xff]
          %v1782 = vld [vmem:[#allocation12] sm:$0x3f]
          %v1784 = vperm.slane %v1782, 0
          %v1785 = vperm.slane %v1782, 1
          %v1786 = vperm.slane %v1782, 2
          %v1787 = vperm.slane %v1782, 3
          %v1788 = vperm.slane %v1782, 4
          %v1789 = vperm.slane %v1782, 5
          %vm1796 = vcmask 261120
          %v1798 = vsel %vm1796, %v1756, 0
          %v1801 = vsel %vm1796, %v1757, 0
          %1803 = vmatpush.msra.mxu0 0.0
          %1804 = vmatpush.msra.mxu0 0.0
          %1805 = vmatpush.msra.mxu0 0.0
          %1806 = vmatpush.msra.mxu0 0.0
          %1807 = vmatpush.msra.mxu0 0.0
          %1808 = vmatpush.msra.mxu0 0.0
          %1809 = vmatpush.msra.mxu0 0.0
          %1810 = vmatpush.msra.mxu0 0.0
          %1811 = vmatpush.msra.mxu0 0.0
          %1812 = vmatpush.msra.mxu0 0.0
          %1813 = vmatpush.msra.mxu0 0.0
          %1814 = vmatpush.msra.mxu0 0.0
          %1815 = vmatpush.msra.mxu0 %v1776
          %1816 = vmatpush.msra.mxu0 %v1770
          %1817 = vmatpush.msra.mxu0 %v1764
          %1818 = vmatpush.msra.mxu0 %v1758
          %1819 = vmatmul.f32.gmra.mxu0 %v1798
          %v1820 = vpop.f32.mrf.mxu0
          %v1821 = vadd.f32 %v1784, %v1820
          %1822 = vmatmul.f32.gmra.mxu0 %v1801
          %v1823 = vpop.f32.mrf.mxu0
          %v1824 = vadd.f32 %v1784, %v1823
          %1825 = vdwg.mxu0
          %1826 = vmatpush.msra.mxu0 0.0
          %1827 = vmatpush.msra.mxu0 0.0
          %1828 = vmatpush.msra.mxu0 0.0
          %1829 = vmatpush.msra.mxu0 0.0
          %1830 = vmatpush.msra.mxu0 0.0
          %1831 = vmatpush.msra.mxu0 0.0
          %1832 = vmatpush.msra.mxu0 0.0
          %1833 = vmatpush.msra.mxu0 0.0
          %1834 = vmatpush.msra.mxu0 0.0
          %1835 = vmatpush.msra.mxu0 0.0
          %1836 = vmatpush.msra.mxu0 0.0
          %1837 = vmatpush.msra.mxu0 0.0
          %1838 = vmatpush.msra.mxu0 %v1777
          %1839 = vmatpush.msra.mxu0 %v1771
          %1840 = vmatpush.msra.mxu0 %v1765
          %1841 = vmatpush.msra.mxu0 %v1759
          %1842 = vmatmul.f32.gmra.mxu0 %v1798
          %v1843 = vpop.f32.mrf.mxu0
          %v1844 = vadd.f32 %v1785, %v1843
          %1845 = vmatmul.f32.gmra.mxu0 %v1801
          %v1846 = vpop.f32.mrf.mxu0
          %v1847 = vadd.f32 %v1785, %v1846
          %1848 = vdwg.mxu0
          %1849 = vmatpush.msra.mxu0 0.0
          %1850 = vmatpush.msra.mxu0 0.0
          %1851 = vmatpush.msra.mxu0 0.0
          %1852 = vmatpush.msra.mxu0 0.0
          %1853 = vmatpush.msra.mxu0 0.0
          %1854 = vmatpush.msra.mxu0 0.0
          %1855 = vmatpush.msra.mxu0 0.0
          %1856 = vmatpush.msra.mxu0 0.0
          %1857 = vmatpush.msra.mxu0 0.0
          %1858 = vmatpush.msra.mxu0 0.0
          %1859 = vmatpush.msra.mxu0 0.0
          %1860 = vmatpush.msra.mxu0 0.0
          %1861 = vmatpush.msra.mxu0 %v1778
          %1862 = vmatpush.msra.mxu0 %v1772
          %1863 = vmatpush.msra.mxu0 %v1766
          %1864 = vmatpush.msra.mxu0 %v1760
          %1865 = vmatmul.f32.gmra.mxu0 %v1798
          %v1866 = vpop.f32.mrf.mxu0
          %v1867 = vadd.f32 %v1786, %v1866
          %1868 = vmatmul.f32.gmra.mxu0 %v1801
          %v1869 = vpop.f32.mrf.mxu0
          %v1870 = vadd.f32 %v1786, %v1869
          %1871 = vdwg.mxu0
          %1872 = vmatpush.msra.mxu0 0.0
          %1873 = vmatpush.msra.mxu0 0.0
          %1874 = vmatpush.msra.mxu0 0.0
          %1875 = vmatpush.msra.mxu0 0.0
          %1876 = vmatpush.msra.mxu0 0.0
          %1877 = vmatpush.msra.mxu0 0.0
          %1878 = vmatpush.msra.mxu0 0.0
          %1879 = vmatpush.msra.mxu0 0.0
          %1880 = vmatpush.msra.mxu0 0.0
          %1881 = vmatpush.msra.mxu0 0.0
          %1882 = vmatpush.msra.mxu0 0.0
          %1883 = vmatpush.msra.mxu0 0.0
          %1884 = vmatpush.msra.mxu0 %v1779
          %1885 = vmatpush.msra.mxu0 %v1773
          %1886 = vmatpush.msra.mxu0 %v1767
          %1887 = vmatpush.msra.mxu0 %v1761
          %1888 = vmatmul.f32.gmra.mxu0 %v1798
          %v1889 = vpop.f32.mrf.mxu0
          %v1890 = vadd.f32 %v1787, %v1889
          %1891 = vmatmul.f32.gmra.mxu0 %v1801
          %v1892 = vpop.f32.mrf.mxu0
          %v1893 = vadd.f32 %v1787, %v1892
          %1894 = vdwg.mxu0
          %1895 = vmatpush.msra.mxu0 0.0
          %1896 = vmatpush.msra.mxu0 0.0
          %1897 = vmatpush.msra.mxu0 0.0
          %1898 = vmatpush.msra.mxu0 0.0
          %1899 = vmatpush.msra.mxu0 0.0
          %1900 = vmatpush.msra.mxu0 0.0
          %1901 = vmatpush.msra.mxu0 0.0
          %1902 = vmatpush.msra.mxu0 0.0
          %1903 = vmatpush.msra.mxu0 0.0
          %1904 = vmatpush.msra.mxu0 0.0
          %1905 = vmatpush.msra.mxu0 0.0
          %1906 = vmatpush.msra.mxu0 0.0
          %1907 = vmatpush.msra.mxu0 %v1780
          %1908 = vmatpush.msra.mxu0 %v1774
          %1909 = vmatpush.msra.mxu0 %v1768
          %1910 = vmatpush.msra.mxu0 %v1762
          %1911 = vmatmul.f32.gmra.mxu0 %v1798
          %v1912 = vpop.f32.mrf.mxu0
          %v1913 = vadd.f32 %v1788, %v1912
          %1914 = vmatmul.f32.gmra.mxu0 %v1801
          %v1915 = vpop.f32.mrf.mxu0
          %v1916 = vadd.f32 %v1788, %v1915
          %1917 = vdwg.mxu0
          %1918 = vmatpush.msra.mxu0 0.0
          %1919 = vmatpush.msra.mxu0 0.0
          %1920 = vmatpush.msra.mxu0 0.0
          %1921 = vmatpush.msra.mxu0 0.0
          %1922 = vmatpush.msra.mxu0 0.0
          %1923 = vmatpush.msra.mxu0 0.0
          %1924 = vmatpush.msra.mxu0 0.0
          %1925 = vmatpush.msra.mxu0 0.0
          %1926 = vmatpush.msra.mxu0 0.0
          %1927 = vmatpush.msra.mxu0 0.0
          %1928 = vmatpush.msra.mxu0 0.0
          %1929 = vmatpush.msra.mxu0 0.0
          %1930 = vmatpush.msra.mxu0 %v1781
          %1931 = vmatpush.msra.mxu0 %v1775
          %1932 = vmatpush.msra.mxu0 %v1769
          %1933 = vmatpush.msra.mxu0 %v1763
          %1934 = vmatmul.f32.gmra.mxu0 %v1798
          %v1935 = vpop.f32.mrf.mxu0
          %v1936 = vadd.f32 %v1789, %v1935
          %1937 = vmatmul.f32.gmra.mxu0 %v1801
          %v1938 = vpop.f32.mrf.mxu0
          %v1939 = vadd.f32 %v1789, %v1938
          %1940 = vdwg.mxu0
          %v1941 = vld [vmem:[#allocation13] sm:$0xff]
          %v1942 = vld [vmem:[#allocation13 + $0x8] sm:$0xff]
          %v1943 = vld [vmem:[#allocation13 + $0x10] sm:$0xff]
          %v1944 = vld [vmem:[#allocation13 + $0x18] sm:$0xff]
          %v1945 = vld [vmem:[#allocation13 + $0x20] sm:$0xff]
          %v1946 = vld [vmem:[#allocation13 + $0x28] sm:$0xff]
          %v1947 = vld [vmem:[#allocation13 + $0x30] sm:$0xff]
          %v1948 = vld [vmem:[#allocation13 + $0x38] sm:$0xff]
          %v1949 = vld [vmem:[#allocation13 + $0x40] sm:$0xff]
          %v1950 = vld [vmem:[#allocation13 + $0x48] sm:$0xff]
          %v1951 = vld [vmem:[#allocation13 + $0x50] sm:$0xff]
          %v1952 = vld [vmem:[#allocation13 + $0x58] sm:$0xff]
          %v1953 = vld [vmem:[#allocation13 + $0x60] sm:$0xff]
          %v1954 = vld [vmem:[#allocation13 + $0x68] sm:$0xff]
          %v1955 = vld [vmem:[#allocation13 + $0x70] sm:$0xff]
          %v1956 = vld [vmem:[#allocation13 + $0x78] sm:$0xff]
          %v1957 = vld [vmem:[#allocation13 + $0x80] sm:$0xff]
          %v1958 = vld [vmem:[#allocation13 + $0x88] sm:$0xff]
          %v1959 = vld [vmem:[#allocation13 + $0x90] sm:$0xff]
          %v1960 = vld [vmem:[#allocation13 + $0x98] sm:$0xff]
          %v1961 = vld [vmem:[#allocation13 + $0xa0] sm:$0xff]
          %v1962 = vld [vmem:[#allocation13 + $0xa8] sm:$0xff]
          %v1963 = vld [vmem:[#allocation13 + $0xb0] sm:$0xff]
          %v1964 = vld [vmem:[#allocation13 + $0xb8] sm:$0xff]
          %v1965 = vld [vmem:[#allocation13 + $0xc0] sm:$0xff]
          %v1966 = vld [vmem:[#allocation13 + $0xc8] sm:$0xff]
          %v1967 = vld [vmem:[#allocation13 + $0xd0] sm:$0xff]
          %v1968 = vld [vmem:[#allocation13 + $0xd8] sm:$0xff]
          %v1969 = vld [vmem:[#allocation13 + $0xe0] sm:$0xff]
          %v1970 = vld [vmem:[#allocation13 + $0xe8] sm:$0xff]
          %v1971 = vld [vmem:[#allocation13 + $0xf0] sm:$0xff]
          %v1972 = vld [vmem:[#allocation13 + $0xf8] sm:$0xff]
          %v1973 = vld [vmem:[#allocation13 + $0x100] sm:$0xff]
          %v1974 = vld [vmem:[#allocation13 + $0x108] sm:$0xff]
          %v1975 = vld [vmem:[#allocation13 + $0x110] sm:$0xff]
          %v1976 = vld [vmem:[#allocation13 + $0x118] sm:$0xff]
          %v1977 = vld [vmem:[#allocation13 + $0x120] sm:$0xff]
          %v1978 = vld [vmem:[#allocation13 + $0x128] sm:$0xff]
          %v1979 = vld [vmem:[#allocation13 + $0x130] sm:$0xff]
          %v1980 = vld [vmem:[#allocation13 + $0x138] sm:$0xff]
          %v1981 = vld [vmem:[#allocation13 + $0x140] sm:$0xff]
          %v1982 = vld [vmem:[#allocation13 + $0x148] sm:$0xff]
          %v1983 = vld [vmem:[#allocation13 + $0x150] sm:$0xff]
          %v1984 = vld [vmem:[#allocation13 + $0x158] sm:$0xff]
          %v1985 = vld [vmem:[#allocation13 + $0x160] sm:$0xff]
          %v1986 = vld [vmem:[#allocation13 + $0x168] sm:$0xff]
          %v1987 = vld [vmem:[#allocation13 + $0x170] sm:$0xff]
          %v1988 = vld [vmem:[#allocation13 + $0x178] sm:$0xff]
          %v1989 = vld [vmem:[#allocation13 + $0x180] sm:$0xff]
          %v1990 = vld [vmem:[#allocation13 + $0x188] sm:$0xff]
          %v1991 = vld [vmem:[#allocation13 + $0x190] sm:$0xff]
          %v1992 = vld [vmem:[#allocation13 + $0x198] sm:$0xff]
          %v1993 = vld [vmem:[#allocation13 + $0x1a0] sm:$0xff]
          %v1994 = vld [vmem:[#allocation13 + $0x1a8] sm:$0xff]
          %v1995 = vld [vmem:[#allocation13 + $0x1b0] sm:$0xff]
          %v1996 = vld [vmem:[#allocation13 + $0x1b8] sm:$0xff]
          %v1997 = vld [vmem:[#allocation13 + $0x1c0] sm:$0xff]
          %v1998 = vld [vmem:[#allocation13 + $0x1c8] sm:$0xff]
          %v1999 = vld [vmem:[#allocation13 + $0x1d0] sm:$0xff]
          %v2000 = vld [vmem:[#allocation13 + $0x1d8] sm:$0xff]
          %v2001 = vld [vmem:[#allocation13 + $0x1e0] sm:$0xff]
          %v2002 = vld [vmem:[#allocation13 + $0x1e8] sm:$0xff]
          %v2003 = vld [vmem:[#allocation13 + $0x1f0] sm:$0xff]
          %v2004 = vld [vmem:[#allocation13 + $0x1f8] sm:$0xff]
          %v2005 = vld [vmem:[#allocation13 + $0x200] sm:$0xff]
          %v2006 = vld [vmem:[#allocation13 + $0x208] sm:$0xff]
          %v2007 = vld [vmem:[#allocation13 + $0x210] sm:$0xff]
          %v2008 = vld [vmem:[#allocation13 + $0x218] sm:$0xff]
          %v2009 = vld [vmem:[#allocation13 + $0x220] sm:$0xff]
          %v2010 = vld [vmem:[#allocation13 + $0x228] sm:$0xff]
          %v2011 = vld [vmem:[#allocation13 + $0x230] sm:$0xff]
          %v2012 = vld [vmem:[#allocation13 + $0x238] sm:$0xff]
          %v2013 = vld [vmem:[#allocation13 + $0x240] sm:$0xff]
          %v2014 = vld [vmem:[#allocation13 + $0x248] sm:$0xff]
          %v2015 = vld [vmem:[#allocation13 + $0x250] sm:$0xff]
          %v2016 = vld [vmem:[#allocation13 + $0x258] sm:$0xff]
          %v2017 = vld [vmem:[#allocation13 + $0x260] sm:$0xff]
          %v2018 = vld [vmem:[#allocation13 + $0x268] sm:$0xff]
          %v2019 = vld [vmem:[#allocation13 + $0x270] sm:$0xff]
          %v2020 = vld [vmem:[#allocation13 + $0x278] sm:$0xff]
          %v2021 = vld [vmem:[#allocation13 + $0x280] sm:$0xff]
          %v2022 = vld [vmem:[#allocation13 + $0x288] sm:$0xff]
          %v2023 = vld [vmem:[#allocation13 + $0x290] sm:$0xff]
          %v2024 = vld [vmem:[#allocation13 + $0x298] sm:$0xff]
          %v2025 = vld [vmem:[#allocation13 + $0x2a0] sm:$0xff]
          %v2026 = vld [vmem:[#allocation13 + $0x2a8] sm:$0xff]
          %v2027 = vld [vmem:[#allocation13 + $0x2b0] sm:$0xff]
          %v2028 = vld [vmem:[#allocation13 + $0x2b8] sm:$0xff]
          %v2029 = vld [vmem:[#allocation13 + $0x2c0] sm:$0xff]
          %v2030 = vld [vmem:[#allocation13 + $0x2c8] sm:$0xff]
          %v2031 = vld [vmem:[#allocation13 + $0x2d0] sm:$0xff]
          %v2032 = vld [vmem:[#allocation13 + $0x2d8] sm:$0xff]
          %v2033 = vld [vmem:[#allocation13 + $0x2e0] sm:$0xff]
          %v2034 = vld [vmem:[#allocation13 + $0x2e8] sm:$0xff]
          %v2035 = vld [vmem:[#allocation13 + $0x2f0] sm:$0xff]
          %v2036 = vld [vmem:[#allocation13 + $0x2f8] sm:$0xff]
          %v2037 = vld [vmem:[#allocation15] sm:$0xff]
          %v2038 = vld [vmem:[#allocation15 + $0x8] sm:$0xff]
          %v2039 = vld [vmem:[#allocation15 + $0x10] sm:$0xff]
          %v2040 = vld [vmem:[#allocation15 + $0x18] sm:$0xff]
          %v2041 = vld [vmem:[#allocation15 + $0x20] sm:$0xff]
          %v2042 = vld [vmem:[#allocation15 + $0x28] sm:$0xff]
          %v2043 = vld [vmem:[#allocation15 + $0x30] sm:$0xff]
          %v2044 = vld [vmem:[#allocation15 + $0x38] sm:$0xff]
          %v2045 = vld [vmem:[#allocation15 + $0x40] sm:$0xff]
          %v2046 = vld [vmem:[#allocation15 + $0x48] sm:$0xff]
          %v2047 = vld [vmem:[#allocation15 + $0x50] sm:$0xff]
          %v2048 = vld [vmem:[#allocation15 + $0x58] sm:$0xff]
          %v2049 = vld [vmem:[#allocation15 + $0x60] sm:$0xff]
          %v2050 = vld [vmem:[#allocation15 + $0x68] sm:$0xff]
          %v2051 = vld [vmem:[#allocation15 + $0x70] sm:$0xff]
          %v2052 = vld [vmem:[#allocation15 + $0x78] sm:$0xff]
          %v2053 = vld [vmem:[#allocation15 + $0x80] sm:$0xff]
          %v2054 = vld [vmem:[#allocation15 + $0x88] sm:$0xff]
          %v2055 = vld [vmem:[#allocation15 + $0x90] sm:$0xff]
          %v2056 = vld [vmem:[#allocation15 + $0x98] sm:$0xff]
          %v2057 = vld [vmem:[#allocation15 + $0xa0] sm:$0xff]
          %v2058 = vld [vmem:[#allocation15 + $0xa8] sm:$0xff]
          %v2059 = vld [vmem:[#allocation15 + $0xb0] sm:$0xff]
          %v2060 = vld [vmem:[#allocation15 + $0xb8] sm:$0xff]
          %v2061 = vld [vmem:[#allocation15 + $0xc0] sm:$0xff]
          %v2062 = vld [vmem:[#allocation15 + $0xc8] sm:$0xff]
          %v2063 = vld [vmem:[#allocation15 + $0xd0] sm:$0xff]
          %v2064 = vld [vmem:[#allocation15 + $0xd8] sm:$0xff]
          %v2065 = vld [vmem:[#allocation15 + $0xe0] sm:$0xff]
          %v2066 = vld [vmem:[#allocation15 + $0xe8] sm:$0xff]
          %v2067 = vld [vmem:[#allocation15 + $0xf0] sm:$0xff]
          %v2068 = vld [vmem:[#allocation15 + $0xf8] sm:$0xff]
          %v2069 = vld [vmem:[#allocation15 + $0x100] sm:$0xff]
          %v2070 = vld [vmem:[#allocation15 + $0x108] sm:$0xff]
          %v2071 = vld [vmem:[#allocation15 + $0x110] sm:$0xff]
          %v2072 = vld [vmem:[#allocation15 + $0x118] sm:$0xff]
          %v2073 = vld [vmem:[#allocation15 + $0x120] sm:$0xff]
          %v2074 = vld [vmem:[#allocation15 + $0x128] sm:$0xff]
          %v2075 = vld [vmem:[#allocation15 + $0x130] sm:$0xff]
          %v2076 = vld [vmem:[#allocation15 + $0x138] sm:$0xff]
          %v2077 = vld [vmem:[#allocation15 + $0x140] sm:$0xff]
          %v2078 = vld [vmem:[#allocation15 + $0x148] sm:$0xff]
          %v2079 = vld [vmem:[#allocation15 + $0x150] sm:$0xff]
          %v2080 = vld [vmem:[#allocation15 + $0x158] sm:$0xff]
          %v2081 = vld [vmem:[#allocation15 + $0x160] sm:$0xff]
          %v2082 = vld [vmem:[#allocation15 + $0x168] sm:$0xff]
          %v2083 = vld [vmem:[#allocation15 + $0x170] sm:$0xff]
          %v2084 = vld [vmem:[#allocation15 + $0x178] sm:$0xff]
          %v2085 = vld [vmem:[#allocation15 + $0x180] sm:$0xff]
          %v2086 = vld [vmem:[#allocation15 + $0x188] sm:$0xff]
          %v2087 = vld [vmem:[#allocation15 + $0x190] sm:$0xff]
          %v2088 = vld [vmem:[#allocation15 + $0x198] sm:$0xff]
          %v2089 = vld [vmem:[#allocation15 + $0x1a0] sm:$0xff]
          %v2090 = vld [vmem:[#allocation15 + $0x1a8] sm:$0xff]
          %v2091 = vld [vmem:[#allocation15 + $0x1b0] sm:$0xff]
          %v2092 = vld [vmem:[#allocation15 + $0x1b8] sm:$0xff]
          %v2093 = vld [vmem:[#allocation15 + $0x1c0] sm:$0xff]
          %v2094 = vld [vmem:[#allocation15 + $0x1c8] sm:$0xff]
          %v2095 = vld [vmem:[#allocation15 + $0x1d0] sm:$0xff]
          %v2096 = vld [vmem:[#allocation15 + $0x1d8] sm:$0xff]
          %v2097 = vld [vmem:[#allocation15 + $0x1e0] sm:$0xff]
          %v2098 = vld [vmem:[#allocation15 + $0x1e8] sm:$0xff]
          %v2099 = vld [vmem:[#allocation15 + $0x1f0] sm:$0xff]
          %v2100 = vld [vmem:[#allocation15 + $0x1f8] sm:$0xff]
          %v2101 = vld [vmem:[#allocation15 + $0x200] sm:$0xff]
          %v2102 = vld [vmem:[#allocation15 + $0x208] sm:$0xff]
          %v2103 = vld [vmem:[#allocation15 + $0x210] sm:$0xff]
          %v2104 = vld [vmem:[#allocation15 + $0x218] sm:$0xff]
          %v2105 = vld [vmem:[#allocation15 + $0x220] sm:$0xff]
          %v2106 = vld [vmem:[#allocation15 + $0x228] sm:$0xff]
          %v2107 = vld [vmem:[#allocation15 + $0x230] sm:$0xff]
          %v2108 = vld [vmem:[#allocation15 + $0x238] sm:$0xff]
          %v2109 = vld [vmem:[#allocation15 + $0x240] sm:$0xff]
          %v2110 = vld [vmem:[#allocation15 + $0x248] sm:$0xff]
          %v2111 = vld [vmem:[#allocation15 + $0x250] sm:$0xff]
          %v2112 = vld [vmem:[#allocation15 + $0x258] sm:$0xff]
          %v2113 = vld [vmem:[#allocation15 + $0x260] sm:$0xff]
          %v2114 = vld [vmem:[#allocation15 + $0x268] sm:$0xff]
          %v2115 = vld [vmem:[#allocation15 + $0x270] sm:$0xff]
          %v2116 = vld [vmem:[#allocation15 + $0x278] sm:$0xff]
          %v2117 = vld [vmem:[#allocation15 + $0x280] sm:$0xff]
          %v2118 = vld [vmem:[#allocation15 + $0x288] sm:$0xff]
          %v2119 = vld [vmem:[#allocation15 + $0x290] sm:$0xff]
          %v2120 = vld [vmem:[#allocation15 + $0x298] sm:$0xff]
          %v2121 = vld [vmem:[#allocation15 + $0x2a0] sm:$0xff]
          %v2122 = vld [vmem:[#allocation15 + $0x2a8] sm:$0xff]
          %v2123 = vld [vmem:[#allocation15 + $0x2b0] sm:$0xff]
          %v2124 = vld [vmem:[#allocation15 + $0x2b8] sm:$0xff]
          %v2125 = vld [vmem:[#allocation15 + $0x2c0] sm:$0xff]
          %v2126 = vld [vmem:[#allocation15 + $0x2c8] sm:$0xff]
          %v2127 = vld [vmem:[#allocation15 + $0x2d0] sm:$0xff]
          %v2128 = vld [vmem:[#allocation15 + $0x2d8] sm:$0xff]
          %v2129 = vld [vmem:[#allocation15 + $0x2e0] sm:$0xff]
          %v2130 = vld [vmem:[#allocation15 + $0x2e8] sm:$0xff]
          %v2131 = vld [vmem:[#allocation15 + $0x2f0] sm:$0xff]
          %v2132 = vld [vmem:[#allocation15 + $0x2f8] sm:$0xff]
          %2133 = vmatpush.msra.mxu0 %v2052
          %2134 = vmatpush.msra.mxu0 %v2051
          %2135 = vmatpush.msra.mxu0 %v2050
          %2136 = vmatpush.msra.mxu0 %v2049
          %2137 = vmatpush.msra.mxu0 %v2048
          %2138 = vmatpush.msra.mxu0 %v2047
          %2139 = vmatpush.msra.mxu0 %v2046
          %2140 = vmatpush.msra.mxu0 %v2045
          %2141 = vmatpush.msra.mxu0 %v2044
          %2142 = vmatpush.msra.mxu0 %v2043
          %2143 = vmatpush.msra.mxu0 %v2042
          %2144 = vmatpush.msra.mxu0 %v2041
          %2145 = vmatpush.msra.mxu0 %v2040
          %2146 = vmatpush.msra.mxu0 %v2039
          %2147 = vmatpush.msra.mxu0 %v2038
          %2148 = vmatpush.msra.mxu0 %v2037
          %2149 = vmatmul.f32.gmra.mxu0 %v1821
          %v2150 = vpop.f32.mrf.mxu0
          %v2151 = vadd.f32 0.0, %v2150
          %2152 = vmatmul.f32.gmra.mxu0 %v1824
          %v2153 = vpop.f32.mrf.mxu0
          %v2154 = vadd.f32 0.0, %v2153
          %2155 = vdwg.mxu0
          %2156 = vmatpush.msra.mxu0 %v2068
          %2157 = vmatpush.msra.mxu0 %v2067
          %2158 = vmatpush.msra.mxu0 %v2066
          %2159 = vmatpush.msra.mxu0 %v2065
          %2160 = vmatpush.msra.mxu0 %v2064
          %2161 = vmatpush.msra.mxu0 %v2063
          %2162 = vmatpush.msra.mxu0 %v2062
          %2163 = vmatpush.msra.mxu0 %v2061
          %2164 = vmatpush.msra.mxu0 %v2060
          %2165 = vmatpush.msra.mxu0 %v2059
          %2166 = vmatpush.msra.mxu0 %v2058
          %2167 = vmatpush.msra.mxu0 %v2057
          %2168 = vmatpush.msra.mxu0 %v2056
          %2169 = vmatpush.msra.mxu0 %v2055
          %2170 = vmatpush.msra.mxu0 %v2054
          %2171 = vmatpush.msra.mxu0 %v2053
          %2172 = vmatmul.f32.gmra.mxu0 %v1844
          %v2173 = vpop.f32.mrf.mxu0
          %v2174 = vadd.f32 %v2151, %v2173
          %2175 = vmatmul.f32.gmra.mxu0 %v1847
          %v2176 = vpop.f32.mrf.mxu0
          %v2177 = vadd.f32 %v2154, %v2176
          %2178 = vdwg.mxu0
          %2179 = vmatpush.msra.mxu0 %v2084
          %2180 = vmatpush.msra.mxu0 %v2083
          %2181 = vmatpush.msra.mxu0 %v2082
          %2182 = vmatpush.msra.mxu0 %v2081
          %2183 = vmatpush.msra.mxu0 %v2080
          %2184 = vmatpush.msra.mxu0 %v2079
          %2185 = vmatpush.msra.mxu0 %v2078
          %2186 = vmatpush.msra.mxu0 %v2077
          %2187 = vmatpush.msra.mxu0 %v2076
          %2188 = vmatpush.msra.mxu0 %v2075
          %2189 = vmatpush.msra.mxu0 %v2074
          %2190 = vmatpush.msra.mxu0 %v2073
          %2191 = vmatpush.msra.mxu0 %v2072
          %2192 = vmatpush.msra.mxu0 %v2071
          %2193 = vmatpush.msra.mxu0 %v2070
          %2194 = vmatpush.msra.mxu0 %v2069
          %2195 = vmatmul.f32.gmra.mxu0 %v1867
          %v2196 = vpop.f32.mrf.mxu0
          %v2197 = vadd.f32 %v2174, %v2196
          %2198 = vmatmul.f32.gmra.mxu0 %v1870
          %v2199 = vpop.f32.mrf.mxu0
          %v2200 = vadd.f32 %v2177, %v2199
          %2201 = vdwg.mxu0
          %2202 = vmatpush.msra.mxu0 %v2100
          %2203 = vmatpush.msra.mxu0 %v2099
          %2204 = vmatpush.msra.mxu0 %v2098
          %2205 = vmatpush.msra.mxu0 %v2097
          %2206 = vmatpush.msra.mxu0 %v2096
          %2207 = vmatpush.msra.mxu0 %v2095
          %2208 = vmatpush.msra.mxu0 %v2094
          %2209 = vmatpush.msra.mxu0 %v2093
          %2210 = vmatpush.msra.mxu0 %v2092
          %2211 = vmatpush.msra.mxu0 %v2091
          %2212 = vmatpush.msra.mxu0 %v2090
          %2213 = vmatpush.msra.mxu0 %v2089
          %2214 = vmatpush.msra.mxu0 %v2088
          %2215 = vmatpush.msra.mxu0 %v2087
          %2216 = vmatpush.msra.mxu0 %v2086
          %2217 = vmatpush.msra.mxu0 %v2085
          %2218 = vmatmul.f32.gmra.mxu0 %v1890
          %v2219 = vpop.f32.mrf.mxu0
          %v2220 = vadd.f32 %v2197, %v2219
          %2221 = vmatmul.f32.gmra.mxu0 %v1893
          %v2222 = vpop.f32.mrf.mxu0
          %v2223 = vadd.f32 %v2200, %v2222
          %2224 = vdwg.mxu0
          %2225 = vmatpush.msra.mxu0 %v2116
          %2226 = vmatpush.msra.mxu0 %v2115
          %2227 = vmatpush.msra.mxu0 %v2114
          %2228 = vmatpush.msra.mxu0 %v2113
          %2229 = vmatpush.msra.mxu0 %v2112
          %2230 = vmatpush.msra.mxu0 %v2111
          %2231 = vmatpush.msra.mxu0 %v2110
          %2232 = vmatpush.msra.mxu0 %v2109
          %2233 = vmatpush.msra.mxu0 %v2108
          %2234 = vmatpush.msra.mxu0 %v2107
          %2235 = vmatpush.msra.mxu0 %v2106
          %2236 = vmatpush.msra.mxu0 %v2105
          %2237 = vmatpush.msra.mxu0 %v2104
          %2238 = vmatpush.msra.mxu0 %v2103
          %2239 = vmatpush.msra.mxu0 %v2102
          %2240 = vmatpush.msra.mxu0 %v2101
          %2241 = vmatmul.f32.gmra.mxu0 %v1913
          %v2242 = vpop.f32.mrf.mxu0
          %v2243 = vadd.f32 %v2220, %v2242
          %2244 = vmatmul.f32.gmra.mxu0 %v1916
          %v2245 = vpop.f32.mrf.mxu0
          %v2246 = vadd.f32 %v2223, %v2245
          %2247 = vdwg.mxu0
          %2248 = vmatpush.msra.mxu0 %v2132
          %2249 = vmatpush.msra.mxu0 %v2131
          %2250 = vmatpush.msra.mxu0 %v2130
          %2251 = vmatpush.msra.mxu0 %v2129
          %2252 = vmatpush.msra.mxu0 %v2128
          %2253 = vmatpush.msra.mxu0 %v2127
          %2254 = vmatpush.msra.mxu0 %v2126
          %2255 = vmatpush.msra.mxu0 %v2125
          %2256 = vmatpush.msra.mxu0 %v2124
          %2257 = vmatpush.msra.mxu0 %v2123
          %2258 = vmatpush.msra.mxu0 %v2122
          %2259 = vmatpush.msra.mxu0 %v2121
          %2260 = vmatpush.msra.mxu0 %v2120
          %2261 = vmatpush.msra.mxu0 %v2119
          %2262 = vmatpush.msra.mxu0 %v2118
          %2263 = vmatpush.msra.mxu0 %v2117
          %2264 = vmatmul.f32.gmra.mxu0 %v1936
          %v2265 = vpop.f32.mrf.mxu0
          %v2266 = vadd.f32 %v2243, %v2265
          %2267 = vmatmul.f32.gmra.mxu0 %v1939
          %v2268 = vpop.f32.mrf.mxu0
          %v2269 = vadd.f32 %v2246, %v2268
          %2270 = vdwg.mxu0
          %2271 = vmatpush.msra.mxu0 %v1956
          %2272 = vmatpush.msra.mxu0 %v1955
          %2273 = vmatpush.msra.mxu0 %v1954
          %2274 = vmatpush.msra.mxu0 %v1953
          %2275 = vmatpush.msra.mxu0 %v1952
          %2276 = vmatpush.msra.mxu0 %v1951
          %2277 = vmatpush.msra.mxu0 %v1950
          %2278 = vmatpush.msra.mxu0 %v1949
          %2279 = vmatpush.msra.mxu0 %v1948
          %2280 = vmatpush.msra.mxu0 %v1947
          %2281 = vmatpush.msra.mxu0 %v1946
          %2282 = vmatpush.msra.mxu0 %v1945
          %2283 = vmatpush.msra.mxu0 %v1944
          %2284 = vmatpush.msra.mxu0 %v1943
          %2285 = vmatpush.msra.mxu0 %v1942
          %2286 = vmatpush.msra.mxu0 %v1941
          %2287 = vmatmul.f32.gmra.mxu0 %v1744
          %v2288 = vpop.f32.mrf.mxu0
          %v2289 = vadd.f32 %v2266, %v2288
          %2290 = vmatmul.f32.gmra.mxu0 %v1750
          %v2291 = vpop.f32.mrf.mxu0
          %v2292 = vadd.f32 %v2269, %v2291
          %2293 = vdwg.mxu0
          %2294 = vmatpush.msra.mxu0 %v1972
          %2295 = vmatpush.msra.mxu0 %v1971
          %2296 = vmatpush.msra.mxu0 %v1970
          %2297 = vmatpush.msra.mxu0 %v1969
          %2298 = vmatpush.msra.mxu0 %v1968
          %2299 = vmatpush.msra.mxu0 %v1967
          %2300 = vmatpush.msra.mxu0 %v1966
          %2301 = vmatpush.msra.mxu0 %v1965
          %2302 = vmatpush.msra.mxu0 %v1964
          %2303 = vmatpush.msra.mxu0 %v1963
          %2304 = vmatpush.msra.mxu0 %v1962
          %2305 = vmatpush.msra.mxu0 %v1961
          %2306 = vmatpush.msra.mxu0 %v1960
          %2307 = vmatpush.msra.mxu0 %v1959
          %2308 = vmatpush.msra.mxu0 %v1958
          %2309 = vmatpush.msra.mxu0 %v1957
          %2310 = vmatmul.f32.gmra.mxu0 %v1745
          %v2311 = vpop.f32.mrf.mxu0
          %v2312 = vadd.f32 %v2289, %v2311
          %2313 = vmatmul.f32.gmra.mxu0 %v1751
          %v2314 = vpop.f32.mrf.mxu0
          %v2315 = vadd.f32 %v2292, %v2314
          %2316 = vdwg.mxu0
          %2317 = vmatpush.msra.mxu0 %v1988
          %2318 = vmatpush.msra.mxu0 %v1987
          %2319 = vmatpush.msra.mxu0 %v1986
          %2320 = vmatpush.msra.mxu0 %v1985
          %2321 = vmatpush.msra.mxu0 %v1984
          %2322 = vmatpush.msra.mxu0 %v1983
          %2323 = vmatpush.msra.mxu0 %v1982
          %2324 = vmatpush.msra.mxu0 %v1981
          %2325 = vmatpush.msra.mxu0 %v1980
          %2326 = vmatpush.msra.mxu0 %v1979
          %2327 = vmatpush.msra.mxu0 %v1978
          %2328 = vmatpush.msra.mxu0 %v1977
          %2329 = vmatpush.msra.mxu0 %v1976
          %2330 = vmatpush.msra.mxu0 %v1975
          %2331 = vmatpush.msra.mxu0 %v1974
          %2332 = vmatpush.msra.mxu0 %v1973
          %2333 = vmatmul.f32.gmra.mxu0 %v1746
          %v2334 = vpop.f32.mrf.mxu0
          %v2335 = vadd.f32 %v2312, %v2334
          %2336 = vmatmul.f32.gmra.mxu0 %v1752
          %v2337 = vpop.f32.mrf.mxu0
          %v2338 = vadd.f32 %v2315, %v2337
          %2339 = vdwg.mxu0
          %2340 = vmatpush.msra.mxu0 %v2004
          %2341 = vmatpush.msra.mxu0 %v2003
          %2342 = vmatpush.msra.mxu0 %v2002
          %2343 = vmatpush.msra.mxu0 %v2001
          %2344 = vmatpush.msra.mxu0 %v2000
          %2345 = vmatpush.msra.mxu0 %v1999
          %2346 = vmatpush.msra.mxu0 %v1998
          %2347 = vmatpush.msra.mxu0 %v1997
          %2348 = vmatpush.msra.mxu0 %v1996
          %2349 = vmatpush.msra.mxu0 %v1995
          %2350 = vmatpush.msra.mxu0 %v1994
          %2351 = vmatpush.msra.mxu0 %v1993
          %2352 = vmatpush.msra.mxu0 %v1992
          %2353 = vmatpush.msra.mxu0 %v1991
          %2354 = vmatpush.msra.mxu0 %v1990
          %2355 = vmatpush.msra.mxu0 %v1989
          %2356 = vmatmul.f32.gmra.mxu0 %v1747
          %v2357 = vpop.f32.mrf.mxu0
          %v2358 = vadd.f32 %v2335, %v2357
          %2359 = vmatmul.f32.gmra.mxu0 %v1753
          %v2360 = vpop.f32.mrf.mxu0
          %v2361 = vadd.f32 %v2338, %v2360
          %2362 = vdwg.mxu0
          %2363 = vmatpush.msra.mxu0 %v2020
          %2364 = vmatpush.msra.mxu0 %v2019
          %2365 = vmatpush.msra.mxu0 %v2018
          %2366 = vmatpush.msra.mxu0 %v2017
          %2367 = vmatpush.msra.mxu0 %v2016
          %2368 = vmatpush.msra.mxu0 %v2015
          %2369 = vmatpush.msra.mxu0 %v2014
          %2370 = vmatpush.msra.mxu0 %v2013
          %2371 = vmatpush.msra.mxu0 %v2012
          %2372 = vmatpush.msra.mxu0 %v2011
          %2373 = vmatpush.msra.mxu0 %v2010
          %2374 = vmatpush.msra.mxu0 %v2009
          %2375 = vmatpush.msra.mxu0 %v2008
          %2376 = vmatpush.msra.mxu0 %v2007
          %2377 = vmatpush.msra.mxu0 %v2006
          %2378 = vmatpush.msra.mxu0 %v2005
          %2379 = vmatmul.f32.gmra.mxu0 %v1748
          %v2380 = vpop.f32.mrf.mxu0
          %v2381 = vadd.f32 %v2358, %v2380
          %2382 = vmatmul.f32.gmra.mxu0 %v1754
          %v2383 = vpop.f32.mrf.mxu0
          %v2384 = vadd.f32 %v2361, %v2383
          %2385 = vdwg.mxu0
          %2386 = vmatpush.msra.mxu0 %v2036
          %2387 = vmatpush.msra.mxu0 %v2035
          %2388 = vmatpush.msra.mxu0 %v2034
          %2389 = vmatpush.msra.mxu0 %v2033
          %2390 = vmatpush.msra.mxu0 %v2032
          %2391 = vmatpush.msra.mxu0 %v2031
          %2392 = vmatpush.msra.mxu0 %v2030
          %2393 = vmatpush.msra.mxu0 %v2029
          %2394 = vmatpush.msra.mxu0 %v2028
          %2395 = vmatpush.msra.mxu0 %v2027
          %2396 = vmatpush.msra.mxu0 %v2026
          %2397 = vmatpush.msra.mxu0 %v2025
          %2398 = vmatpush.msra.mxu0 %v2024
          %2399 = vmatpush.msra.mxu0 %v2023
          %2400 = vmatpush.msra.mxu0 %v2022
          %2401 = vmatpush.msra.mxu0 %v2021
          %2402 = vmatmul.f32.gmra.mxu0 %v1749
          %v2403 = vpop.f32.mrf.mxu0
          %v2404 = vadd.f32 %v2381, %v2403
          %2405 = vmatmul.f32.gmra.mxu0 %v1755
          %v2406 = vpop.f32.mrf.mxu0
          %v2407 = vadd.f32 %v2384, %v2406
          %2408 = vdwg.mxu0
          %v2409 = vld [vmem:[#allocation16] sm:$0x1]
          %v2411 = vperm.slane %v2409, 0
          %v2413 = vadd.f32 %v2404, %v2411
          %v2414 = vadd.f32 %v2407, %v2411
          %2415 = vst [vmem:[#allocation18] sm:$0xff] %v2413
          %2416 = vst [vmem:[#allocation18 + $0x8] sm:$0xff] %v2414
        $region100: #{tpu_custom_call.1} parent=55 // pred_fallthru
          _
        // Predicated region
        $region101: #{tpu_custom_call.1} parent=55 // pred_check
          %p2417 = pneg %p264
        $region102: #{tpu_custom_call.1} parent=55 // pred_check_branch
          %2419 = sbr.rel (%p2417) target = $region104
        $region103: #{tpu_custom_call.1} parent=55 // pred_region
          %s2420 = smul.u32 2, %s32
          %2422 = vsyncadd [#allocation5], 0
          %s2423 = smul.addr %s2420, 8
          %s2424 = scalar_lea.hbm %s9, %s2423
          %s2425 = sshll.u32 [#allocation18], 4
          %s2426 = int_to_ptr.vmem [resolvable:$true] %s2425
          %s2427 = sshll.u32 %s2424, 4
          %s2428 = int_to_ptr.hbm [resolvable:$true] %s2427
          %2433 = dma.vmem_to_hbm [thread:$0]  %s2426, 256, %s2428, [#allocation5], 128, 128, 8
        $region104: #{tpu_custom_call.1} parent=55 // pred_fallthru
          _
        // Predicated region
        $region105: #{tpu_custom_call.1} parent=55 // pred_check
          %p2434 = pneg %p264
        $region106: #{tpu_custom_call.1} parent=55 // pred_check_branch
          %2436 = sbr.rel (%p2434) target = $region108
        $region107: #{tpu_custom_call.1} parent=55 // pred_region
          %2438 = dma.done [#allocation5], 256
        $region108: #{tpu_custom_call.1} parent=55 // pred_fallthru
          _
      $region56: #{tpu_custom_call.1} parent=5 // pred_fallthru
        _
      %p2439 = scmp.le.s32.totalorder 2, %s23
      // Predicated region
      $region109: #{tpu_custom_call.1} parent=5 // pred_check
        %p2440 = pneg %p2439
      $region110: #{tpu_custom_call.1} parent=5 // pred_check_branch
        %2442 = sbr.rel (%p2440) target = $region112
      $region111: #{tpu_custom_call.1} parent=5 // pred_region
        %s2443 = ssub.s32 %s23, 2
      $region112: #{tpu_custom_call.1} parent=5 // pred_fallthru
        _
    $region6: #{tpu_custom_call.1} parent=1 // loop_footer
      %s27 = sadd.s32 1, %s23
    $region7: #{tpu_custom_call.1} parent=1 // loop_footer_branch
      %22 = sbr.rel target = $region3
    $region8: #{tpu_custom_call.1} parent=1 // loop_exit
      _
    %2444 = vsyncpa [#allocation4], 1
    %s2445 = scalar_lea.sflag [#allocation4], 1
    %2446 = vsyncpa %s2445, 1
    %2447 = vsyncpa [#allocation7], 1
    %2448 = vsyncpa [#allocation11], 1
    %2449 = vsyncpa [#allocation14], 1
    %2450 = vsyncpa [#allocation17], 1
    %2451 = vsyncpa [#allocation5], 1
    %s2452 = scalar_lea.sflag [#allocation5], 1
    %2453 = vsyncpa %s2452, 1

</llo_original>
